<compile_context>
chip_gen: v7x
topology: tpu7x:2x2x1
jax: 0.10.0
libtpu: 0.0.40
codegen_flags: <defaults>
</compile_context>

<pallas_src>
import functools
import math

import jax
import jax.numpy as jnp
from jax.experimental import pallas as pl
from jax.experimental.pallas import tpu as pltpu


# ----------------------------- Pallas kernel --------------------------------
def shopee_kernel(x_ref, wbb_ref, fcw_ref, fcb_ref, aw_ref, lab_ref,
                  out_ref, feat_ref,
                  *, scale, cos_m, sin_m, th, mm, inv_hw):
    # x_ref   : (TB, HW, C)       image tile, channels-last, spatial flattened
    # wbb_ref : (C, Cmid_p)       synthetic backbone 1x1-conv weight (padded)
    # fcw_ref : (Cmid_p, fc_p)    FC weight with BatchNorm folded in (padded)
    # fcb_ref : (1, fc_p)         FC bias with BatchNorm folded in (padded)
    # aw_ref  : (fc_p, TN)        pre-normalized, pre-transposed ArcMargin weight tile
    # lab_ref : (TB, 1) int32     labels
    # out_ref : (TB, TN)          scaled ArcFace logits tile
    # feat_ref: (TB, fc_p) VMEM scratch — normalized embedding, reused across class tiles
    j = pl.program_id(1)

    # ---- per-batch-tile features: compute once (class tile 0), reuse after ----
    @pl.when(j == 0)
    def _():
        tb, hw, c = x_ref.shape
        # backbone: 1x1 conv (channel matmul) + ReLU; batch collapsed into M
        x2d = x_ref[...].reshape(tb * hw, c)
        h = jnp.dot(x2d, wbb_ref[...], preferred_element_type=jnp.float32)
        h = jnp.maximum(h, 0.0)
        # AdaptiveAvgPool2d(1)
        pooled = jnp.sum(h.reshape(tb, hw, -1), axis=1) * inv_hw          # (tb, Cmid_p)
        # dropout (eval: identity) + Linear (BatchNorm1d folded into weights)
        feat = jnp.dot(pooled, fcw_ref[...],
                       preferred_element_type=jnp.float32) + fcb_ref[...]
        # F.normalize(feat, dim=1) with PyTorch eps=1e-12 semantics
        ssq = jnp.sum(feat * feat, axis=1, keepdims=True)
        feat_ref[...] = feat * jax.lax.rsqrt(jnp.maximum(ssq, 1e-24))

    # ---- ArcMarginProduct on this class tile ----
    cosine = jnp.dot(feat_ref[...], aw_ref[...],
                     preferred_element_type=jnp.float32)                  # (tb, tn)
    # clamp before sqrt: f32 accumulation can make cosine marginally > 1
    sine = jnp.sqrt(jnp.maximum(1.0 - cosine * cosine, 0.0))
    phi = cosine * cos_m - sine * sin_m
    phi = jnp.where(cosine > th, phi, cosine - mm)                        # easy_margin=False
    tn = out_ref.shape[1]
    cls = jax.lax.broadcasted_iota(jnp.int32, cosine.shape, 1) + j * tn
    one_hot = (cls == lab_ref[...]).astype(jnp.float32)                   # ls_eps = 0.0
    out_ref[...] = ((one_hot * phi + (1.0 - one_hot) * cosine) * scale
                    ).astype(out_ref.dtype)


# ------------------------------ wrapper --------------------------------------
def _pad_axis(a, axis, multiple):
    pad = (-a.shape[axis]) % multiple
    if pad == 0:
        return a
    widths = [(0, 0)] * a.ndim
    widths[axis] = (0, pad)
    return jnp.pad(a, widths)


def shopee_forward(image, label, params, *, scale=30.0, margin=0.5,
                   bn_eps=1e-5, batch_tile=8, class_tile=128):
    B, C, H, W = image.shape
    HW = H * W
    n_classes, _ = params['arc_w'].shape

    # ---- one-time weight transforms (free at runtime vs. per-call kernel work) ----
    # fold BatchNorm1d (eval) into the FC layer
    s = params['bn_gamma'] * jax.lax.rsqrt(params['bn_var'] + bn_eps)          # (1, fc)
    fc_w = params['fc_w'] * s                                                  # (Cmid, fc)
    fc_b = (params['fc_b'] - params['bn_mean']) * s + params['bn_beta']        # (1, fc)
    # pre-normalize + pre-transpose the ArcMargin weight -> (fc, n_classes)
    aw = params['arc_w']
    aw = aw / jnp.maximum(jnp.linalg.norm(aw, axis=1, keepdims=True), 1e-12)
    aw_t = aw.T

    # ---- lane-aligned zero padding (sliced off after the call) ----
    w_bb = _pad_axis(params['w_bb'], 1, 128)                    # (C, Cmid_p)
    fc_w = _pad_axis(_pad_axis(fc_w, 0, 128), 1, 128)           # (Cmid_p, fc_p)
    fc_b = _pad_axis(fc_b, 1, 128)                              # (1, fc_p)
    aw_t = _pad_axis(_pad_axis(aw_t, 0, 128), 1, class_tile)    # (fc_p, nc_p)
    cmid_p, fc_p = fc_w.shape
    nc_p = aw_t.shape[1]

    # channels-last, spatial flattened; batch padded to the batch tile
    x = jnp.transpose(image, (0, 2, 3, 1)).reshape(B, HW, C)
    x = _pad_axis(x, 0, batch_tile)
    lab = _pad_axis(label.reshape(B, 1).astype(jnp.int32), 0, batch_tile)
    b_p = x.shape[0]

    kernel = functools.partial(
        shopee_kernel,
        scale=float(scale),
        cos_m=math.cos(margin),
        sin_m=math.sin(margin),
        th=math.cos(math.pi - margin),
        mm=math.sin(math.pi - margin) * margin,
        inv_hw=1.0 / HW,
    )

    tb, tn = batch_tile, class_tile
    grid = (b_p // tb, nc_p // tn)

    out = pl.pallas_call(
        kernel,
        out_shape=jax.ShapeDtypeStruct((b_p, nc_p), jnp.float32),
        grid_spec=pltpu.PrefetchScalarGridSpec(
            num_scalar_prefetch=0,
            grid=grid,
            in_specs=[
                pl.BlockSpec((tb, HW, C), lambda i, j: (i, 0, 0)),     # x tile
                pl.BlockSpec((C, cmid_p), lambda i, j: (0, 0)),        # backbone weight
                pl.BlockSpec((cmid_p, fc_p), lambda i, j: (0, 0)),     # folded FC weight
                pl.BlockSpec((1, fc_p), lambda i, j: (0, 0)),          # folded FC bias
                pl.BlockSpec((fc_p, tn), lambda i, j: (0, j)),         # arc weight tile
                pl.BlockSpec((tb, 1), lambda i, j: (i, 0)),            # labels
            ],
            out_specs=pl.BlockSpec((tb, tn), lambda i, j: (i, j)),
            scratch_shapes=[pltpu.VMEM((tb, fc_p), jnp.float32)],
        ),
        compiler_params=pltpu.CompilerParams(
            dimension_semantics=("parallel", "arbitrary")),
    )(x, w_bb, fc_w, fc_b, aw_t, lab)

    return out[:B, :n_classes]


# ---------------------- pure-JAX reference (for checking) --------------------
def shopee_reference(image, label, params, *, scale=30.0, margin=0.5, bn_eps=1e-5):
    B, C, H, W = image.shape
    x = jnp.transpose(image, (0, 2, 3, 1)).reshape(B, H * W, C)
    h = jnp.maximum(jnp.einsum('bsc,cm->bsm', x, params['w_bb']), 0.0)
    pooled = jnp.mean(h, axis=1)
    feat = pooled @ params['fc_w'] + params['fc_b']
    feat = (feat - params['bn_mean']) * jax.lax.rsqrt(params['bn_var'] + bn_eps)
    feat = feat * params['bn_gamma'] + params['bn_beta']
    feat_n = feat / jnp.maximum(jnp.linalg.norm(feat, axis=1, keepdims=True), 1e-12)
    w = params['arc_w']
    w_n = w / jnp.maximum(jnp.linalg.norm(w, axis=1, keepdims=True), 1e-12)
    cosine = feat_n @ w_n.T
    sine = jnp.sqrt(jnp.maximum(1.0 - cosine * cosine, 0.0))
    phi = cosine * math.cos(margin) - sine * math.sin(margin)
    phi = jnp.where(cosine > math.cos(math.pi - margin), phi,
                    cosine - math.sin(math.pi - margin) * margin)
    one_hot = jax.nn.one_hot(label, w.shape[0], dtype=jnp.float32)
    return (one_hot * phi + (1.0 - one_hot) * cosine) * scale


# --------------------------------- main ---------------------------------------
if __name__ == "__main__":
    # small, deterministic shapes
    B, C, H, W = 2, 4, 16, 16          # image: NCHW
    C_MID = 8                          # synthetic backbone output channels ("in_features")
    FC_DIM = 32                        # embedding_size
    N_CLASSES = 16

    key = jax.random.PRNGKey(0)
    k_img, k_bb, k_fc, k_arc, k_lbl = jax.random.split(key, 5)

    image = jax.random.normal(k_img, (B, C, H, W), dtype=jnp.float32)
    label = jax.random.randint(k_lbl, (B,), 0, N_CLASSES, dtype=jnp.int32)

    def xavier(k, shape, fan_in, fan_out):
        lim = math.sqrt(6.0 / (fan_in + fan_out))
        return jax.random.uniform(k, shape, jnp.float32, -lim, lim)

    params = {
        'w_bb':     xavier(k_bb, (C, C_MID), C, C_MID),
        'fc_w':     xavier(k_fc, (C_MID, FC_DIM), C_MID, FC_DIM),   # stored as (in, out)
        'fc_b':     jnp.zeros((1, FC_DIM), jnp.float32),
        'bn_gamma': jnp.ones((1, FC_DIM), jnp.float32),
        'bn_beta':  jnp.zeros((1, FC_DIM), jnp.float32),
        'bn_mean':  jnp.zeros((1, FC_DIM), jnp.float32),
        'bn_var':   jnp.ones((1, FC_DIM), jnp.float32),
        'arc_w':    xavier(k_arc, (N_CLASSES, FC_DIM), FC_DIM, N_CLASSES),
    }

    logits = shopee_forward(image, label, params, scale=30.0, margin=0.5)
    logits = jax.block_until_ready(logits)

    ref = shopee_reference(image, label, params, scale=30.0, margin=0.5)
    assert logits.shape == (B, N_CLASSES)
    assert bool(jnp.all(jnp.isfinite(logits)))
    assert bool(jnp.allclose(logits, ref, rtol=1e-2, atol=1e-2)), \
        f"mismatch: max abs err {jnp.max(jnp.abs(logits - ref))}"

    print("KERNEL_OK")
</pallas_src>

<mosaic_0001>
module attributes {stable_mosaic.version = 11 : i64} {
  func.func @shopee_kernel(%arg0: i32, %arg1: i32, %arg2: memref<8x256x4xf32, #tpu.memory_space<vmem>>, %arg3: memref<4x128xf32, #tpu.memory_space<vmem>>, %arg4: memref<128x128xf32, #tpu.memory_space<vmem>>, %arg5: memref<1x128xf32, #tpu.memory_space<vmem>>, %arg6: memref<128x128xf32, #tpu.memory_space<vmem>>, %arg7: memref<8x1xi32, #tpu.memory_space<vmem>>, %arg8: memref<8x128xf32, #tpu.memory_space<vmem>>, %arg9: memref<8x128xf32, #tpu.memory_space<vmem>>) attributes {dimension_semantics = [#tpu.dimension_semantics<parallel>, #tpu.dimension_semantics<arbitrary>], iteration_bounds = array<i64: 1, 1>, scalar_prefetch = 0 : i64, scratch_operands = 1 : i64, tpu.core_type = #tpu.core_type<tc>, window_params = [{transform_indices = @transform_0, window_bounds = array<i64: 8, 256, 4>}, {pipeline_mode = #tpu.pipeline_mode<synchronous>, transform_indices = @transform_1, window_bounds = array<i64: 4, 128>}, {pipeline_mode = #tpu.pipeline_mode<synchronous>, transform_indices = @transform_2, window_bounds = array<i64: 128, 128>}, {pipeline_mode = #tpu.pipeline_mode<synchronous>, transform_indices = @transform_3, window_bounds = array<i64: 1, 128>}, {transform_indices = @transform_4, window_bounds = array<i64: 128, 128>}, {transform_indices = @transform_5, window_bounds = array<i64: 8, 1>}, {transform_indices = @transform_6, window_bounds = array<i64: 8, 128>}]} {
    %c0_i32 = arith.constant 0 : i32
    %0 = arith.cmpi eq, %arg1, %c0_i32 : i32
    %1 = arith.extui %0 : i1 to i32
    %c0_i32_0 = arith.constant 0 : i32
    %2 = arith.cmpi ne, %1, %c0_i32_0 : i32
    scf.if %2 {
      %c0_16 = arith.constant 0 : index
      %c0_17 = arith.constant 0 : index
      %c0_18 = arith.constant 0 : index
      %39 = vector.load %arg2[%c0_16, %c0_17, %c0_18] : memref<8x256x4xf32, #tpu.memory_space<vmem>>, vector<8x256x4xf32>
      %40 = vector.shape_cast %39 : vector<8x256x4xf32> to vector<2048x4xf32>
      %c0_19 = arith.constant 0 : index
      %c0_20 = arith.constant 0 : index
      %41 = vector.load %arg3[%c0_19, %c0_20] : memref<4x128xf32, #tpu.memory_space<vmem>>, vector<4x128xf32>
      %cst_21 = arith.constant dense<0.000000e+00> : vector<2048x128xf32>
      %42 = tpu.matmul %40, %41, %cst_21 {dimension_numbers = #tpu.dot_dimension_numbers<[1], [0], [0], [1], [0, 0, 1, 1], [], []>} : vector<2048x4xf32>, vector<4x128xf32>, vector<2048x128xf32> -> vector<2048x128xf32>
      %cst_22 = arith.constant 0.000000e+00 : f32
      %43 = vector.broadcast %cst_22 : f32 to vector<2048x128xf32>
      %44 = arith.maximumf %42, %43 : vector<2048x128xf32>
      %45 = vector.shape_cast %44 : vector<2048x128xf32> to vector<8x256x128xf32>
      %cst_23 = arith.constant dense<0.000000e+00> : vector<8x128xf32>
      %46 = vector.multi_reduction <add>, %45, %cst_23 [1] : vector<8x256x128xf32> to vector<8x128xf32>
      %cst_24 = arith.constant 3.906250e-03 : f32
      %47 = vector.broadcast %cst_24 : f32 to vector<8x128xf32>
      %48 = arith.mulf %46, %47 : vector<8x128xf32>
      %c0_25 = arith.constant 0 : index
      %c0_26 = arith.constant 0 : index
      %49 = vector.load %arg4[%c0_25, %c0_26] : memref<128x128xf32, #tpu.memory_space<vmem>>, vector<128x128xf32>
      %cst_27 = arith.constant dense<0.000000e+00> : vector<8x128xf32>
      %50 = tpu.matmul %48, %49, %cst_27 {dimension_numbers = #tpu.dot_dimension_numbers<[1], [0], [0], [1], [0, 0, 1, 1], [], []>} : vector<8x128xf32>, vector<128x128xf32>, vector<8x128xf32> -> vector<8x128xf32>
      %c0_28 = arith.constant 0 : index
      %c0_29 = arith.constant 0 : index
      %51 = vector.load %arg5[%c0_28, %c0_29] : memref<1x128xf32, #tpu.memory_space<vmem>>, vector<1x128xf32>
      %52 = vector.broadcast %51 : vector<1x128xf32> to vector<8x128xf32>
      %53 = arith.addf %50, %52 : vector<8x128xf32>
      %54 = arith.mulf %53, %53 : vector<8x128xf32>
      %cst_30 = arith.constant dense<0.000000e+00> : vector<8xf32>
      %55 = vector.multi_reduction <add>, %54, %cst_30 [1] : vector<8x128xf32> to vector<8xf32>
      %56 = vector.shape_cast %55 : vector<8xf32> to vector<8x1xf32>
      %cst_31 = arith.constant 1.000000e-24 : f32
      %57 = vector.broadcast %cst_31 : f32 to vector<8x1xf32>
      %58 = arith.maximumf %56, %57 : vector<8x1xf32>
      %59 = math.rsqrt %58 : vector<8x1xf32>
      %60 = vector.broadcast %59 : vector<8x1xf32> to vector<8x128xf32>
      %61 = arith.mulf %53, %60 : vector<8x128xf32>
      %c0_32 = arith.constant 0 : index
      %c0_33 = arith.constant 0 : index
      %62 = vector.load %arg9[%c0_32, %c0_33] : memref<8x128xf32, #tpu.memory_space<vmem>>, vector<8x128xf32>
      tpu.vector_store %arg9[%c0_32, %c0_33], %61 {strides = array<i32>} : memref<8x128xf32, #tpu.memory_space<vmem>>, vector<8x128xf32>,
    } else {
    }
    %c0 = arith.constant 0 : index
    %c0_1 = arith.constant 0 : index
    %3 = vector.load %arg9[%c0, %c0_1] : memref<8x128xf32, #tpu.memory_space<vmem>>, vector<8x128xf32>
    %c0_2 = arith.constant 0 : index
    %c0_3 = arith.constant 0 : index
    %4 = vector.load %arg6[%c0_2, %c0_3] : memref<128x128xf32, #tpu.memory_space<vmem>>, vector<128x128xf32>
    %cst = arith.constant dense<0.000000e+00> : vector<8x128xf32>
    %5 = tpu.matmul %3, %4, %cst {dimension_numbers = #tpu.dot_dimension_numbers<[1], [0], [0], [1], [0, 0, 1, 1], [], []>} : vector<8x128xf32>, vector<128x128xf32>, vector<8x128xf32> -> vector<8x128xf32>
    %6 = arith.mulf %5, %5 : vector<8x128xf32>
    %cst_4 = arith.constant 1.000000e+00 : f32
    %7 = vector.broadcast %cst_4 : f32 to vector<8x128xf32>
    %8 = arith.subf %7, %6 : vector<8x128xf32>
    %cst_5 = arith.constant 0.000000e+00 : f32
    %9 = vector.broadcast %cst_5 : f32 to vector<8x128xf32>
    %10 = arith.maximumf %8, %9 : vector<8x128xf32>
    %11 = math.sqrt %10 : vector<8x128xf32>
    %cst_6 = arith.constant 0.87758255 : f32
    %12 = vector.broadcast %cst_6 : f32 to vector<8x128xf32>
    %13 = arith.mulf %5, %12 : vector<8x128xf32>
    %cst_7 = arith.constant 0.47942555 : f32
    %14 = vector.broadcast %cst_7 : f32 to vector<8x128xf32>
    %15 = arith.mulf %11, %14 : vector<8x128xf32>
    %16 = arith.subf %13, %15 : vector<8x128xf32>
    %cst_8 = arith.constant -0.87758255 : f32
    %17 = vector.broadcast %cst_8 : f32 to vector<8x128xf32>
    %18 = arith.cmpf ogt, %5, %17 : vector<8x128xf32>
    %cst_9 = arith.constant 0.239712775 : f32
    %19 = vector.broadcast %cst_9 : f32 to vector<8x128xf32>
    %20 = arith.subf %5, %19 : vector<8x128xf32>
    %21 = arith.select %18, %16, %20 : vector<8x128xi1>, vector<8x128xf32>
    %22 = tpu.iota {dimensions = array<i32: 1>} : vector<8x128xi32>
    %c128_i32 = arith.constant 128 : i32
    %23 = arith.muli %arg1, %c128_i32 : i32
    %24 = vector.broadcast %23 : i32 to vector<8x128xi32>
    %25 = arith.addi %22, %24 : vector<8x128xi32>
    %c0_10 = arith.constant 0 : index
    %c0_11 = arith.constant 0 : index
    %26 = vector.load %arg7[%c0_10, %c0_11] : memref<8x1xi32, #tpu.memory_space<vmem>>, vector<8x1xi32>
    %27 = vector.broadcast %26 : vector<8x1xi32> to vector<8x128xi32>
    %28 = arith.cmpi eq, %25, %27 : vector<8x128xi32>
    %29 = arith.extui %28 : vector<8x128xi1> to vector<8x128xi32>
    %30 = arith.sitofp %29 : vector<8x128xi32> to vector<8x128xf32>
    %31 = arith.mulf %30, %21 : vector<8x128xf32>
    %cst_12 = arith.constant 1.000000e+00 : f32
    %32 = vector.broadcast %cst_12 : f32 to vector<8x128xf32>
    %33 = arith.subf %32, %30 : vector<8x128xf32>
    %34 = arith.mulf %33, %5 : vector<8x128xf32>
    %35 = arith.addf %31, %34 : vector<8x128xf32>
    %cst_13 = arith.constant 3.000000e+01 : f32
    %36 = vector.broadcast %cst_13 : f32 to vector<8x128xf32>
    %37 = arith.mulf %35, %36 : vector<8x128xf32>
    %c0_14 = arith.constant 0 : index
    %c0_15 = arith.constant 0 : index
    %38 = vector.load %arg8[%c0_14, %c0_15] : memref<8x128xf32, #tpu.memory_space<vmem>>, vector<8x128xf32>
    tpu.vector_store %arg8[%c0_14, %c0_15], %37 {strides = array<i32>} : memref<8x128xf32, #tpu.memory_space<vmem>>, vector<8x128xf32>,
    return
  }
  func.func @transform_0(%arg0: i32, %arg1: i32) -> (i32, i32, i32) {
    %c0_i32 = arith.constant 0 : i32
    %c0_i32_0 = arith.constant 0 : i32
    %c0_i32_1 = arith.constant 0 : i32
    return %arg0, %c0_i32, %c0_i32_0 : i32, i32, i32
  }
  func.func @transform_1(%arg0: i32, %arg1: i32) -> (i32, i32) {
    %c0_i32 = arith.constant 0 : i32
    %c0_i32_0 = arith.constant 0 : i32
    %c0_i32_1 = arith.constant 0 : i32
    return %c0_i32, %c0_i32_0 : i32, i32
  }
  func.func @transform_2(%arg0: i32, %arg1: i32) -> (i32, i32) {
    %c0_i32 = arith.constant 0 : i32
    %c0_i32_0 = arith.constant 0 : i32
    %c0_i32_1 = arith.constant 0 : i32
    return %c0_i32, %c0_i32_0 : i32, i32
  }
  func.func @transform_3(%arg0: i32, %arg1: i32) -> (i32, i32) {
    %c0_i32 = arith.constant 0 : i32
    %c0_i32_0 = arith.constant 0 : i32
    %c0_i32_1 = arith.constant 0 : i32
    return %c0_i32, %c0_i32_0 : i32, i32
  }
  func.func @transform_4(%arg0: i32, %arg1: i32) -> (i32, i32) {
    %c0_i32 = arith.constant 0 : i32
    %c0_i32_0 = arith.constant 0 : i32
    return %c0_i32, %arg1 : i32, i32
  }
  func.func @transform_5(%arg0: i32, %arg1: i32) -> (i32, i32) {
    %c0_i32 = arith.constant 0 : i32
    %c0_i32_0 = arith.constant 0 : i32
    return %arg0, %c0_i32 : i32, i32
  }
  func.func @transform_6(%arg0: i32, %arg1: i32) -> (i32, i32) {
    %c0_i32 = arith.constant 0 : i32
    return %arg0, %arg1 : i32, i32
  }
}

</mosaic_0001>

<llo_original>
// kernel: tpu_custom_call.1
$region0: #{tpu_custom_call.1}
  #allocation0 [shape = 'u32[]', space=smem, size = 0x4, offset = 0x4, fixed_abs, tag = 'smem constant byte address 0x4 - core index']
  #allocation1 [shape = 'u32[144,128]{1,0:T(1,128)}', space=vmem, size = 0x12000, scoped, tag = 'internal scratch']
  #allocation2 [shape = 'f32[8,128]{1,0:T(8,128)}', space=vmem, size = 0x1000, scoped, tag = 'scratch operand']
  %s0 = inlined_call_operand.vmem [shape: f32[8,256,4], index: 0, kind: input, shape index: {}]
  %s1 = inlined_call_operand.vmem [shape: f32[4,128], index: 1, kind: input, shape index: {}]
  %s2 = inlined_call_operand.vmem [shape: f32[128,128], index: 2, kind: input, shape index: {}]
  %s3 = inlined_call_operand.vmem [shape: f32[1,128], index: 3, kind: input, shape index: {}]
  %s4 = inlined_call_operand.vmem [shape: f32[128,128], index: 4, kind: input, shape index: {}]
  %s5 = inlined_call_operand.vmem [shape: s32[8,1], index: 5, kind: input, shape index: {}]
  %s6 = inlined_call_operand.hbm [shape: f32[8,128], index: 6, kind: output, shape index: {}]
  %s7 = sld [smem:[#allocation0]]
  $region38: #{tpu_custom_call.1} parent=0
    _
  %s9 = ssub.s32 1, %s7
  %s10 = scalar_select 0, %s9, %s7
  $region1: #{tpu_custom_call.1} parent=0
    #allocation3 [shape = 'u8[4096]{0}', space=vmem, size = 0x1000, scoped, tag = 'output window, operand 0, single buffered']
    #allocation4 [shape = 's32[1]{0}', space=sflag, size = 0x4, scoped, tag = 'scoped memory for tpu_custom_call.1']
    %11 = vsyncpa [#allocation4], 0
    // Predicated region
    $region2: #{tpu_custom_call.1} parent=1 // pred_check
      _
    $region3: #{tpu_custom_call.1} parent=1 // pred_check_branch
      %13 = sbr.rel (0) target = $region5
    $region4: #{tpu_custom_call.1} parent=1 // pred_region
      _
    $region5: #{tpu_custom_call.1} parent=1 // pred_fallthru
      _
    // Predicated region
    $region6: #{tpu_custom_call.1} parent=1 // pred_check
      _
    $region7: #{tpu_custom_call.1} parent=1 // pred_check_branch
      %15 = sbr.rel (0) target = $region9
    $region8: #{tpu_custom_call.1} parent=1 // pred_region
      _
    $region9: #{tpu_custom_call.1} parent=1 // pred_fallthru
      _
    // Predicated region
    $region10: #{tpu_custom_call.1} parent=1 // pred_check
      _
    $region11: #{tpu_custom_call.1} parent=1 // pred_check_branch
      %17 = sbr.rel (0) target = $region13
    $region12: #{tpu_custom_call.1} parent=1 // pred_region
      _
    $region13: #{tpu_custom_call.1} parent=1 // pred_fallthru
      _
    // Predicated region
    $region14: #{tpu_custom_call.1} parent=1 // pred_check
      _
    $region15: #{tpu_custom_call.1} parent=1 // pred_check_branch
      %19 = sbr.rel (0) target = $region17
    $region16: #{tpu_custom_call.1} parent=1 // pred_region
      _
    $region17: #{tpu_custom_call.1} parent=1 // pred_fallthru
      _
    // Predicated region
    $region18: #{tpu_custom_call.1} parent=1 // pred_check
      _
    $region19: #{tpu_custom_call.1} parent=1 // pred_check_branch
      %21 = sbr.rel (0) target = $region21
    $region20: #{tpu_custom_call.1} parent=1 // pred_region
      _
    $region21: #{tpu_custom_call.1} parent=1 // pred_fallthru
      _
    // Predicated region
    $region22: #{tpu_custom_call.1} parent=1 // pred_check
      _
    $region23: #{tpu_custom_call.1} parent=1 // pred_check_branch
      %23 = sbr.rel (0) target = $region25
    $region24: #{tpu_custom_call.1} parent=1 // pred_region
      _
    $region25: #{tpu_custom_call.1} parent=1 // pred_fallthru
      _
    %p24 = scmp.eq.s32.totalorder 0, 0
    // Predicated region
    $region26: #{tpu_custom_call.1} parent=1 // pred_check
      %p25 = pneg %p24
    $region27: #{tpu_custom_call.1} parent=1 // pred_check_branch
      %27 = sbr.rel (%p25) target = $region29
    $region28: #{tpu_custom_call.1} parent=1 // pred_region
      %v28 = vld [vmem:[%s0] sm:$0xff]
      %v29 = vld [vmem:[%s0 + $0x8] sm:$0xff]
      %v30 = vld [vmem:[%s0 + $0x10] sm:$0xff]
      %v31 = vld [vmem:[%s0 + $0x18] sm:$0xff]
      %v32 = vld [vmem:[%s0 + $0x20] sm:$0xff]
      %v33 = vld [vmem:[%s0 + $0x28] sm:$0xff]
      %v34 = vld [vmem:[%s0 + $0x30] sm:$0xff]
      %v35 = vld [vmem:[%s0 + $0x38] sm:$0xff]
      %v36 = vld [vmem:[%s0 + $0x40] sm:$0xff]
      %v37 = vld [vmem:[%s0 + $0x48] sm:$0xff]
      %v38 = vld [vmem:[%s0 + $0x50] sm:$0xff]
      %v39 = vld [vmem:[%s0 + $0x58] sm:$0xff]
      %v40 = vld [vmem:[%s0 + $0x60] sm:$0xff]
      %v41 = vld [vmem:[%s0 + $0x68] sm:$0xff]
      %v42 = vld [vmem:[%s0 + $0x70] sm:$0xff]
      %v43 = vld [vmem:[%s0 + $0x78] sm:$0xff]
      %v44 = vld [vmem:[%s0 + $0x80] sm:$0xff]
      %v45 = vld [vmem:[%s0 + $0x88] sm:$0xff]
      %v46 = vld [vmem:[%s0 + $0x90] sm:$0xff]
      %v47 = vld [vmem:[%s0 + $0x98] sm:$0xff]
      %v48 = vld [vmem:[%s0 + $0xa0] sm:$0xff]
      %v49 = vld [vmem:[%s0 + $0xa8] sm:$0xff]
      %v50 = vld [vmem:[%s0 + $0xb0] sm:$0xff]
      %v51 = vld [vmem:[%s0 + $0xb8] sm:$0xff]
      %v52 = vld [vmem:[%s0 + $0xc0] sm:$0xff]
      %v53 = vld [vmem:[%s0 + $0xc8] sm:$0xff]
      %v54 = vld [vmem:[%s0 + $0xd0] sm:$0xff]
      %v55 = vld [vmem:[%s0 + $0xd8] sm:$0xff]
      %v56 = vld [vmem:[%s0 + $0xe0] sm:$0xff]
      %v57 = vld [vmem:[%s0 + $0xe8] sm:$0xff]
      %v58 = vld [vmem:[%s0 + $0xf0] sm:$0xff]
      %v59 = vld [vmem:[%s0 + $0xf8] sm:$0xff]
      %v60 = vld [vmem:[%s0 + $0x100] sm:$0xff]
      %v61 = vld [vmem:[%s0 + $0x108] sm:$0xff]
      %v62 = vld [vmem:[%s0 + $0x110] sm:$0xff]
      %v63 = vld [vmem:[%s0 + $0x118] sm:$0xff]
      %v64 = vld [vmem:[%s0 + $0x120] sm:$0xff]
      %v65 = vld [vmem:[%s0 + $0x128] sm:$0xff]
      %v66 = vld [vmem:[%s0 + $0x130] sm:$0xff]
      %v67 = vld [vmem:[%s0 + $0x138] sm:$0xff]
      %v68 = vld [vmem:[%s0 + $0x140] sm:$0xff]
      %v69 = vld [vmem:[%s0 + $0x148] sm:$0xff]
      %v70 = vld [vmem:[%s0 + $0x150] sm:$0xff]
      %v71 = vld [vmem:[%s0 + $0x158] sm:$0xff]
      %v72 = vld [vmem:[%s0 + $0x160] sm:$0xff]
      %v73 = vld [vmem:[%s0 + $0x168] sm:$0xff]
      %v74 = vld [vmem:[%s0 + $0x170] sm:$0xff]
      %v75 = vld [vmem:[%s0 + $0x178] sm:$0xff]
      %v76 = vld [vmem:[%s0 + $0x180] sm:$0xff]
      %v77 = vld [vmem:[%s0 + $0x188] sm:$0xff]
      %v78 = vld [vmem:[%s0 + $0x190] sm:$0xff]
      %v79 = vld [vmem:[%s0 + $0x198] sm:$0xff]
      %v80 = vld [vmem:[%s0 + $0x1a0] sm:$0xff]
      %v81 = vld [vmem:[%s0 + $0x1a8] sm:$0xff]
      %v82 = vld [vmem:[%s0 + $0x1b0] sm:$0xff]
      %v83 = vld [vmem:[%s0 + $0x1b8] sm:$0xff]
      %v84 = vld [vmem:[%s0 + $0x1c0] sm:$0xff]
      %v85 = vld [vmem:[%s0 + $0x1c8] sm:$0xff]
      %v86 = vld [vmem:[%s0 + $0x1d0] sm:$0xff]
      %v87 = vld [vmem:[%s0 + $0x1d8] sm:$0xff]
      %v88 = vld [vmem:[%s0 + $0x1e0] sm:$0xff]
      %v89 = vld [vmem:[%s0 + $0x1e8] sm:$0xff]
      %v90 = vld [vmem:[%s0 + $0x1f0] sm:$0xff]
      %v91 = vld [vmem:[%s0 + $0x1f8] sm:$0xff]
      %v92 = vld [vmem:[%s0 + $0x200] sm:$0xff]
      %v93 = vld [vmem:[%s0 + $0x208] sm:$0xff]
      %v94 = vld [vmem:[%s0 + $0x210] sm:$0xff]
      %v95 = vld [vmem:[%s0 + $0x218] sm:$0xff]
      %v96 = vld [vmem:[%s0 + $0x220] sm:$0xff]
      %v97 = vld [vmem:[%s0 + $0x228] sm:$0xff]
      %v98 = vld [vmem:[%s0 + $0x230] sm:$0xff]
      %v99 = vld [vmem:[%s0 + $0x238] sm:$0xff]
      %v100 = vld [vmem:[%s0 + $0x240] sm:$0xff]
      %v101 = vld [vmem:[%s0 + $0x248] sm:$0xff]
      %v102 = vld [vmem:[%s0 + $0x250] sm:$0xff]
      %v103 = vld [vmem:[%s0 + $0x258] sm:$0xff]
      %v104 = vld [vmem:[%s0 + $0x260] sm:$0xff]
      %v105 = vld [vmem:[%s0 + $0x268] sm:$0xff]
      %v106 = vld [vmem:[%s0 + $0x270] sm:$0xff]
      %v107 = vld [vmem:[%s0 + $0x278] sm:$0xff]
      %v108 = vld [vmem:[%s0 + $0x280] sm:$0xff]
      %v109 = vld [vmem:[%s0 + $0x288] sm:$0xff]
      %v110 = vld [vmem:[%s0 + $0x290] sm:$0xff]
      %v111 = vld [vmem:[%s0 + $0x298] sm:$0xff]
      %v112 = vld [vmem:[%s0 + $0x2a0] sm:$0xff]
      %v113 = vld [vmem:[%s0 + $0x2a8] sm:$0xff]
      %v114 = vld [vmem:[%s0 + $0x2b0] sm:$0xff]
      %v115 = vld [vmem:[%s0 + $0x2b8] sm:$0xff]
      %v116 = vld [vmem:[%s0 + $0x2c0] sm:$0xff]
      %v117 = vld [vmem:[%s0 + $0x2c8] sm:$0xff]
      %v118 = vld [vmem:[%s0 + $0x2d0] sm:$0xff]
      %v119 = vld [vmem:[%s0 + $0x2d8] sm:$0xff]
      %v120 = vld [vmem:[%s0 + $0x2e0] sm:$0xff]
      %v121 = vld [vmem:[%s0 + $0x2e8] sm:$0xff]
      %v122 = vld [vmem:[%s0 + $0x2f0] sm:$0xff]
      %v123 = vld [vmem:[%s0 + $0x2f8] sm:$0xff]
      %v124 = vld [vmem:[%s0 + $0x300] sm:$0xff]
      %v125 = vld [vmem:[%s0 + $0x308] sm:$0xff]
      %v126 = vld [vmem:[%s0 + $0x310] sm:$0xff]
      %v127 = vld [vmem:[%s0 + $0x318] sm:$0xff]
      %v128 = vld [vmem:[%s0 + $0x320] sm:$0xff]
      %v129 = vld [vmem:[%s0 + $0x328] sm:$0xff]
      %v130 = vld [vmem:[%s0 + $0x330] sm:$0xff]
      %v131 = vld [vmem:[%s0 + $0x338] sm:$0xff]
      %v132 = vld [vmem:[%s0 + $0x340] sm:$0xff]
      %v133 = vld [vmem:[%s0 + $0x348] sm:$0xff]
      %v134 = vld [vmem:[%s0 + $0x350] sm:$0xff]
      %v135 = vld [vmem:[%s0 + $0x358] sm:$0xff]
      %v136 = vld [vmem:[%s0 + $0x360] sm:$0xff]
      %v137 = vld [vmem:[%s0 + $0x368] sm:$0xff]
      %v138 = vld [vmem:[%s0 + $0x370] sm:$0xff]
      %v139 = vld [vmem:[%s0 + $0x378] sm:$0xff]
      %v140 = vld [vmem:[%s0 + $0x380] sm:$0xff]
      %v141 = vld [vmem:[%s0 + $0x388] sm:$0xff]
      %v142 = vld [vmem:[%s0 + $0x390] sm:$0xff]
      %v143 = vld [vmem:[%s0 + $0x398] sm:$0xff]
      %v144 = vld [vmem:[%s0 + $0x3a0] sm:$0xff]
      %v145 = vld [vmem:[%s0 + $0x3a8] sm:$0xff]
      %v146 = vld [vmem:[%s0 + $0x3b0] sm:$0xff]
      %v147 = vld [vmem:[%s0 + $0x3b8] sm:$0xff]
      %v148 = vld [vmem:[%s0 + $0x3c0] sm:$0xff]
      %v149 = vld [vmem:[%s0 + $0x3c8] sm:$0xff]
      %v150 = vld [vmem:[%s0 + $0x3d0] sm:$0xff]
      %v151 = vld [vmem:[%s0 + $0x3d8] sm:$0xff]
      %v152 = vld [vmem:[%s0 + $0x3e0] sm:$0xff]
      %v153 = vld [vmem:[%s0 + $0x3e8] sm:$0xff]
      %v154 = vld [vmem:[%s0 + $0x3f0] sm:$0xff]
      %v155 = vld [vmem:[%s0 + $0x3f8] sm:$0xff]
      %v156 = vld [vmem:[%s0 + $0x400] sm:$0xff]
      %v157 = vld [vmem:[%s0 + $0x408] sm:$0xff]
      %v158 = vld [vmem:[%s0 + $0x410] sm:$0xff]
      %v159 = vld [vmem:[%s0 + $0x418] sm:$0xff]
      %v160 = vld [vmem:[%s0 + $0x420] sm:$0xff]
      %v161 = vld [vmem:[%s0 + $0x428] sm:$0xff]
      %v162 = vld [vmem:[%s0 + $0x430] sm:$0xff]
      %v163 = vld [vmem:[%s0 + $0x438] sm:$0xff]
      %v164 = vld [vmem:[%s0 + $0x440] sm:$0xff]
      %v165 = vld [vmem:[%s0 + $0x448] sm:$0xff]
      %v166 = vld [vmem:[%s0 + $0x450] sm:$0xff]
      %v167 = vld [vmem:[%s0 + $0x458] sm:$0xff]
      %v168 = vld [vmem:[%s0 + $0x460] sm:$0xff]
      %v169 = vld [vmem:[%s0 + $0x468] sm:$0xff]
      %v170 = vld [vmem:[%s0 + $0x470] sm:$0xff]
      %v171 = vld [vmem:[%s0 + $0x478] sm:$0xff]
      %v172 = vld [vmem:[%s0 + $0x480] sm:$0xff]
      %v173 = vld [vmem:[%s0 + $0x488] sm:$0xff]
      %v174 = vld [vmem:[%s0 + $0x490] sm:$0xff]
      %v175 = vld [vmem:[%s0 + $0x498] sm:$0xff]
      %v176 = vld [vmem:[%s0 + $0x4a0] sm:$0xff]
      %v177 = vld [vmem:[%s0 + $0x4a8] sm:$0xff]
      %v178 = vld [vmem:[%s0 + $0x4b0] sm:$0xff]
      %v179 = vld [vmem:[%s0 + $0x4b8] sm:$0xff]
      %v180 = vld [vmem:[%s0 + $0x4c0] sm:$0xff]
      %v181 = vld [vmem:[%s0 + $0x4c8] sm:$0xff]
      %v182 = vld [vmem:[%s0 + $0x4d0] sm:$0xff]
      %v183 = vld [vmem:[%s0 + $0x4d8] sm:$0xff]
      %v184 = vld [vmem:[%s0 + $0x4e0] sm:$0xff]
      %v185 = vld [vmem:[%s0 + $0x4e8] sm:$0xff]
      %v186 = vld [vmem:[%s0 + $0x4f0] sm:$0xff]
      %v187 = vld [vmem:[%s0 + $0x4f8] sm:$0xff]
      %v188 = vld [vmem:[%s0 + $0x500] sm:$0xff]
      %v189 = vld [vmem:[%s0 + $0x508] sm:$0xff]
      %v190 = vld [vmem:[%s0 + $0x510] sm:$0xff]
      %v191 = vld [vmem:[%s0 + $0x518] sm:$0xff]
      %v192 = vld [vmem:[%s0 + $0x520] sm:$0xff]
      %v193 = vld [vmem:[%s0 + $0x528] sm:$0xff]
      %v194 = vld [vmem:[%s0 + $0x530] sm:$0xff]
      %v195 = vld [vmem:[%s0 + $0x538] sm:$0xff]
      %v196 = vld [vmem:[%s0 + $0x540] sm:$0xff]
      %v197 = vld [vmem:[%s0 + $0x548] sm:$0xff]
      %v198 = vld [vmem:[%s0 + $0x550] sm:$0xff]
      %v199 = vld [vmem:[%s0 + $0x558] sm:$0xff]
      %v200 = vld [vmem:[%s0 + $0x560] sm:$0xff]
      %v201 = vld [vmem:[%s0 + $0x568] sm:$0xff]
      %v202 = vld [vmem:[%s0 + $0x570] sm:$0xff]
      %v203 = vld [vmem:[%s0 + $0x578] sm:$0xff]
      %v204 = vld [vmem:[%s0 + $0x580] sm:$0xff]
      %v205 = vld [vmem:[%s0 + $0x588] sm:$0xff]
      %v206 = vld [vmem:[%s0 + $0x590] sm:$0xff]
      %v207 = vld [vmem:[%s0 + $0x598] sm:$0xff]
      %v208 = vld [vmem:[%s0 + $0x5a0] sm:$0xff]
      %v209 = vld [vmem:[%s0 + $0x5a8] sm:$0xff]
      %v210 = vld [vmem:[%s0 + $0x5b0] sm:$0xff]
      %v211 = vld [vmem:[%s0 + $0x5b8] sm:$0xff]
      %v212 = vld [vmem:[%s0 + $0x5c0] sm:$0xff]
      %v213 = vld [vmem:[%s0 + $0x5c8] sm:$0xff]
      %v214 = vld [vmem:[%s0 + $0x5d0] sm:$0xff]
      %v215 = vld [vmem:[%s0 + $0x5d8] sm:$0xff]
      %v216 = vld [vmem:[%s0 + $0x5e0] sm:$0xff]
      %v217 = vld [vmem:[%s0 + $0x5e8] sm:$0xff]
      %v218 = vld [vmem:[%s0 + $0x5f0] sm:$0xff]
      %v219 = vld [vmem:[%s0 + $0x5f8] sm:$0xff]
      %v220 = vld [vmem:[%s0 + $0x600] sm:$0xff]
      %v221 = vld [vmem:[%s0 + $0x608] sm:$0xff]
      %v222 = vld [vmem:[%s0 + $0x610] sm:$0xff]
      %v223 = vld [vmem:[%s0 + $0x618] sm:$0xff]
      %v224 = vld [vmem:[%s0 + $0x620] sm:$0xff]
      %v225 = vld [vmem:[%s0 + $0x628] sm:$0xff]
      %v226 = vld [vmem:[%s0 + $0x630] sm:$0xff]
      %v227 = vld [vmem:[%s0 + $0x638] sm:$0xff]
      %v228 = vld [vmem:[%s0 + $0x640] sm:$0xff]
      %v229 = vld [vmem:[%s0 + $0x648] sm:$0xff]
      %v230 = vld [vmem:[%s0 + $0x650] sm:$0xff]
      %v231 = vld [vmem:[%s0 + $0x658] sm:$0xff]
      %v232 = vld [vmem:[%s0 + $0x660] sm:$0xff]
      %v233 = vld [vmem:[%s0 + $0x668] sm:$0xff]
      %v234 = vld [vmem:[%s0 + $0x670] sm:$0xff]
      %v235 = vld [vmem:[%s0 + $0x678] sm:$0xff]
      %v236 = vld [vmem:[%s0 + $0x680] sm:$0xff]
      %v237 = vld [vmem:[%s0 + $0x688] sm:$0xff]
      %v238 = vld [vmem:[%s0 + $0x690] sm:$0xff]
      %v239 = vld [vmem:[%s0 + $0x698] sm:$0xff]
      %v240 = vld [vmem:[%s0 + $0x6a0] sm:$0xff]
      %v241 = vld [vmem:[%s0 + $0x6a8] sm:$0xff]
      %v242 = vld [vmem:[%s0 + $0x6b0] sm:$0xff]
      %v243 = vld [vmem:[%s0 + $0x6b8] sm:$0xff]
      %v244 = vld [vmem:[%s0 + $0x6c0] sm:$0xff]
      %v245 = vld [vmem:[%s0 + $0x6c8] sm:$0xff]
      %v246 = vld [vmem:[%s0 + $0x6d0] sm:$0xff]
      %v247 = vld [vmem:[%s0 + $0x6d8] sm:$0xff]
      %v248 = vld [vmem:[%s0 + $0x6e0] sm:$0xff]
      %v249 = vld [vmem:[%s0 + $0x6e8] sm:$0xff]
      %v250 = vld [vmem:[%s0 + $0x6f0] sm:$0xff]
      %v251 = vld [vmem:[%s0 + $0x6f8] sm:$0xff]
      %v252 = vld [vmem:[%s0 + $0x700] sm:$0xff]
      %v253 = vld [vmem:[%s0 + $0x708] sm:$0xff]
      %v254 = vld [vmem:[%s0 + $0x710] sm:$0xff]
      %v255 = vld [vmem:[%s0 + $0x718] sm:$0xff]
      %v256 = vld [vmem:[%s0 + $0x720] sm:$0xff]
      %v257 = vld [vmem:[%s0 + $0x728] sm:$0xff]
      %v258 = vld [vmem:[%s0 + $0x730] sm:$0xff]
      %v259 = vld [vmem:[%s0 + $0x738] sm:$0xff]
      %v260 = vld [vmem:[%s0 + $0x740] sm:$0xff]
      %v261 = vld [vmem:[%s0 + $0x748] sm:$0xff]
      %v262 = vld [vmem:[%s0 + $0x750] sm:$0xff]
      %v263 = vld [vmem:[%s0 + $0x758] sm:$0xff]
      %v264 = vld [vmem:[%s0 + $0x760] sm:$0xff]
      %v265 = vld [vmem:[%s0 + $0x768] sm:$0xff]
      %v266 = vld [vmem:[%s0 + $0x770] sm:$0xff]
      %v267 = vld [vmem:[%s0 + $0x778] sm:$0xff]
      %v268 = vld [vmem:[%s0 + $0x780] sm:$0xff]
      %v269 = vld [vmem:[%s0 + $0x788] sm:$0xff]
      %v270 = vld [vmem:[%s0 + $0x790] sm:$0xff]
      %v271 = vld [vmem:[%s0 + $0x798] sm:$0xff]
      %v272 = vld [vmem:[%s0 + $0x7a0] sm:$0xff]
      %v273 = vld [vmem:[%s0 + $0x7a8] sm:$0xff]
      %v274 = vld [vmem:[%s0 + $0x7b0] sm:$0xff]
      %v275 = vld [vmem:[%s0 + $0x7b8] sm:$0xff]
      %v276 = vld [vmem:[%s0 + $0x7c0] sm:$0xff]
      %v277 = vld [vmem:[%s0 + $0x7c8] sm:$0xff]
      %v278 = vld [vmem:[%s0 + $0x7d0] sm:$0xff]
      %v279 = vld [vmem:[%s0 + $0x7d8] sm:$0xff]
      %v280 = vld [vmem:[%s0 + $0x7e0] sm:$0xff]
      %v281 = vld [vmem:[%s0 + $0x7e8] sm:$0xff]
      %v282 = vld [vmem:[%s0 + $0x7f0] sm:$0xff]
      %v283 = vld [vmem:[%s0 + $0x7f8] sm:$0xff]
      %v284 = vld [vmem:[%s1] sm:$0xf]
      %vm285 = vcmask 31744
      %v287 = vsel %vm285, %v28, 0
      %v290 = vsel %vm285, %v29, 0
      %v293 = vsel %vm285, %v30, 0
      %v296 = vsel %vm285, %v31, 0
      %v299 = vsel %vm285, %v32, 0
      %v302 = vsel %vm285, %v33, 0
      %v305 = vsel %vm285, %v34, 0
      %v308 = vsel %vm285, %v35, 0
      %v311 = vsel %vm285, %v36, 0
      %v314 = vsel %vm285, %v37, 0
      %v317 = vsel %vm285, %v38, 0
      %v320 = vsel %vm285, %v39, 0
      %v323 = vsel %vm285, %v40, 0
      %v326 = vsel %vm285, %v41, 0
      %v329 = vsel %vm285, %v42, 0
      %v332 = vsel %vm285, %v43, 0
      %v335 = vsel %vm285, %v44, 0
      %v338 = vsel %vm285, %v45, 0
      %v341 = vsel %vm285, %v46, 0
      %v344 = vsel %vm285, %v47, 0
      %v347 = vsel %vm285, %v48, 0
      %v350 = vsel %vm285, %v49, 0
      %v353 = vsel %vm285, %v50, 0
      %v356 = vsel %vm285, %v51, 0
      %v359 = vsel %vm285, %v52, 0
      %v362 = vsel %vm285, %v53, 0
      %v365 = vsel %vm285, %v54, 0
      %v368 = vsel %vm285, %v55, 0
      %v371 = vsel %vm285, %v56, 0
      %v374 = vsel %vm285, %v57, 0
      %v377 = vsel %vm285, %v58, 0
      %v380 = vsel %vm285, %v59, 0
      %v383 = vsel %vm285, %v60, 0
      %v386 = vsel %vm285, %v61, 0
      %v389 = vsel %vm285, %v62, 0
      %v392 = vsel %vm285, %v63, 0
      %v395 = vsel %vm285, %v64, 0
      %v398 = vsel %vm285, %v65, 0
      %v401 = vsel %vm285, %v66, 0
      %v404 = vsel %vm285, %v67, 0
      %v407 = vsel %vm285, %v68, 0
      %v410 = vsel %vm285, %v69, 0
      %v413 = vsel %vm285, %v70, 0
      %v416 = vsel %vm285, %v71, 0
      %v419 = vsel %vm285, %v72, 0
      %v422 = vsel %vm285, %v73, 0
      %v425 = vsel %vm285, %v74, 0
      %v428 = vsel %vm285, %v75, 0
      %v431 = vsel %vm285, %v76, 0
      %v434 = vsel %vm285, %v77, 0
      %v437 = vsel %vm285, %v78, 0
      %v440 = vsel %vm285, %v79, 0
      %v443 = vsel %vm285, %v80, 0
      %v446 = vsel %vm285, %v81, 0
      %v449 = vsel %vm285, %v82, 0
      %v452 = vsel %vm285, %v83, 0
      %v455 = vsel %vm285, %v84, 0
      %v458 = vsel %vm285, %v85, 0
      %v461 = vsel %vm285, %v86, 0
      %v464 = vsel %vm285, %v87, 0
      %v467 = vsel %vm285, %v88, 0
      %v470 = vsel %vm285, %v89, 0
      %v473 = vsel %vm285, %v90, 0
      %v476 = vsel %vm285, %v91, 0
      %v479 = vsel %vm285, %v92, 0
      %v482 = vsel %vm285, %v93, 0
      %v485 = vsel %vm285, %v94, 0
      %v488 = vsel %vm285, %v95, 0
      %v491 = vsel %vm285, %v96, 0
      %v494 = vsel %vm285, %v97, 0
      %v497 = vsel %vm285, %v98, 0
      %v500 = vsel %vm285, %v99, 0
      %v503 = vsel %vm285, %v100, 0
      %v506 = vsel %vm285, %v101, 0
      %v509 = vsel %vm285, %v102, 0
      %v512 = vsel %vm285, %v103, 0
      %v515 = vsel %vm285, %v104, 0
      %v518 = vsel %vm285, %v105, 0
      %v521 = vsel %vm285, %v106, 0
      %v524 = vsel %vm285, %v107, 0
      %v527 = vsel %vm285, %v108, 0
      %v530 = vsel %vm285, %v109, 0
      %v533 = vsel %vm285, %v110, 0
      %v536 = vsel %vm285, %v111, 0
      %v539 = vsel %vm285, %v112, 0
      %v542 = vsel %vm285, %v113, 0
      %v545 = vsel %vm285, %v114, 0
      %v548 = vsel %vm285, %v115, 0
      %v551 = vsel %vm285, %v116, 0
      %v554 = vsel %vm285, %v117, 0
      %v557 = vsel %vm285, %v118, 0
      %v560 = vsel %vm285, %v119, 0
      %v563 = vsel %vm285, %v120, 0
      %v566 = vsel %vm285, %v121, 0
      %v569 = vsel %vm285, %v122, 0
      %v572 = vsel %vm285, %v123, 0
      %v575 = vsel %vm285, %v124, 0
      %v578 = vsel %vm285, %v125, 0
      %v581 = vsel %vm285, %v126, 0
      %v584 = vsel %vm285, %v127, 0
      %v587 = vsel %vm285, %v128, 0
      %v590 = vsel %vm285, %v129, 0
      %v593 = vsel %vm285, %v130, 0
      %v596 = vsel %vm285, %v131, 0
      %v599 = vsel %vm285, %v132, 0
      %v602 = vsel %vm285, %v133, 0
      %v605 = vsel %vm285, %v134, 0
      %v608 = vsel %vm285, %v135, 0
      %v611 = vsel %vm285, %v136, 0
      %v614 = vsel %vm285, %v137, 0
      %v617 = vsel %vm285, %v138, 0
      %v620 = vsel %vm285, %v139, 0
      %v623 = vsel %vm285, %v140, 0
      %v626 = vsel %vm285, %v141, 0
      %v629 = vsel %vm285, %v142, 0
      %v632 = vsel %vm285, %v143, 0
      %v635 = vsel %vm285, %v144, 0
      %v638 = vsel %vm285, %v145, 0
      %v641 = vsel %vm285, %v146, 0
      %v644 = vsel %vm285, %v147, 0
      %v647 = vsel %vm285, %v148, 0
      %v650 = vsel %vm285, %v149, 0
      %v653 = vsel %vm285, %v150, 0
      %v656 = vsel %vm285, %v151, 0
      %v659 = vsel %vm285, %v152, 0
      %v662 = vsel %vm285, %v153, 0
      %v665 = vsel %vm285, %v154, 0
      %v668 = vsel %vm285, %v155, 0
      %v671 = vsel %vm285, %v156, 0
      %v674 = vsel %vm285, %v157, 0
      %v677 = vsel %vm285, %v158, 0
      %v680 = vsel %vm285, %v159, 0
      %v683 = vsel %vm285, %v160, 0
      %v686 = vsel %vm285, %v161, 0
      %v689 = vsel %vm285, %v162, 0
      %v692 = vsel %vm285, %v163, 0
      %v695 = vsel %vm285, %v164, 0
      %v698 = vsel %vm285, %v165, 0
      %v701 = vsel %vm285, %v166, 0
      %v704 = vsel %vm285, %v167, 0
      %v707 = vsel %vm285, %v168, 0
      %v710 = vsel %vm285, %v169, 0
      %v713 = vsel %vm285, %v170, 0
      %v716 = vsel %vm285, %v171, 0
      %v719 = vsel %vm285, %v172, 0
      %v722 = vsel %vm285, %v173, 0
      %v725 = vsel %vm285, %v174, 0
      %v728 = vsel %vm285, %v175, 0
      %v731 = vsel %vm285, %v176, 0
      %v734 = vsel %vm285, %v177, 0
      %v737 = vsel %vm285, %v178, 0
      %v740 = vsel %vm285, %v179, 0
      %v743 = vsel %vm285, %v180, 0
      %v746 = vsel %vm285, %v181, 0
      %v749 = vsel %vm285, %v182, 0
      %v752 = vsel %vm285, %v183, 0
      %v755 = vsel %vm285, %v184, 0
      %v758 = vsel %vm285, %v185, 0
      %v761 = vsel %vm285, %v186, 0
      %v764 = vsel %vm285, %v187, 0
      %v767 = vsel %vm285, %v188, 0
      %v770 = vsel %vm285, %v189, 0
      %v773 = vsel %vm285, %v190, 0
      %v776 = vsel %vm285, %v191, 0
      %v779 = vsel %vm285, %v192, 0
      %v782 = vsel %vm285, %v193, 0
      %v785 = vsel %vm285, %v194, 0
      %v788 = vsel %vm285, %v195, 0
      %v791 = vsel %vm285, %v196, 0
      %v794 = vsel %vm285, %v197, 0
      %v797 = vsel %vm285, %v198, 0
      %v800 = vsel %vm285, %v199, 0
      %v803 = vsel %vm285, %v200, 0
      %v806 = vsel %vm285, %v201, 0
      %v809 = vsel %vm285, %v202, 0
      %v812 = vsel %vm285, %v203, 0
      %v815 = vsel %vm285, %v204, 0
      %v818 = vsel %vm285, %v205, 0
      %v821 = vsel %vm285, %v206, 0
      %v824 = vsel %vm285, %v207, 0
      %v827 = vsel %vm285, %v208, 0
      %v830 = vsel %vm285, %v209, 0
      %v833 = vsel %vm285, %v210, 0
      %v836 = vsel %vm285, %v211, 0
      %v839 = vsel %vm285, %v212, 0
      %v842 = vsel %vm285, %v213, 0
      %v845 = vsel %vm285, %v214, 0
      %v848 = vsel %vm285, %v215, 0
      %v851 = vsel %vm285, %v216, 0
      %v854 = vsel %vm285, %v217, 0
      %v857 = vsel %vm285, %v218, 0
      %v860 = vsel %vm285, %v219, 0
      %v863 = vsel %vm285, %v220, 0
      %v866 = vsel %vm285, %v221, 0
      %v869 = vsel %vm285, %v222, 0
      %v872 = vsel %vm285, %v223, 0
      %v875 = vsel %vm285, %v224, 0
      %v878 = vsel %vm285, %v225, 0
      %v881 = vsel %vm285, %v226, 0
      %v884 = vsel %vm285, %v227, 0
      %v887 = vsel %vm285, %v228, 0
      %v890 = vsel %vm285, %v229, 0
      %v893 = vsel %vm285, %v230, 0
      %v896 = vsel %vm285, %v231, 0
      %v899 = vsel %vm285, %v232, 0
      %v902 = vsel %vm285, %v233, 0
      %v905 = vsel %vm285, %v234, 0
      %v908 = vsel %vm285, %v235, 0
      %v911 = vsel %vm285, %v236, 0
      %v914 = vsel %vm285, %v237, 0
      %v917 = vsel %vm285, %v238, 0
      %v920 = vsel %vm285, %v239, 0
      %v923 = vsel %vm285, %v240, 0
      %v926 = vsel %vm285, %v241, 0
      %v929 = vsel %vm285, %v242, 0
      %v932 = vsel %vm285, %v243, 0
      %v935 = vsel %vm285, %v244, 0
      %v938 = vsel %vm285, %v245, 0
      %v941 = vsel %vm285, %v246, 0
      %v944 = vsel %vm285, %v247, 0
      %v947 = vsel %vm285, %v248, 0
      %v950 = vsel %vm285, %v249, 0
      %v953 = vsel %vm285, %v250, 0
      %v956 = vsel %vm285, %v251, 0
      %v959 = vsel %vm285, %v252, 0
      %v962 = vsel %vm285, %v253, 0
      %v965 = vsel %vm285, %v254, 0
      %v968 = vsel %vm285, %v255, 0
      %v971 = vsel %vm285, %v256, 0
      %v974 = vsel %vm285, %v257, 0
      %v977 = vsel %vm285, %v258, 0
      %v980 = vsel %vm285, %v259, 0
      %v983 = vsel %vm285, %v260, 0
      %v986 = vsel %vm285, %v261, 0
      %v989 = vsel %vm285, %v262, 0
      %v992 = vsel %vm285, %v263, 0
      %v995 = vsel %vm285, %v264, 0
      %v998 = vsel %vm285, %v265, 0
      %v1001 = vsel %vm285, %v266, 0
      %v1004 = vsel %vm285, %v267, 0
      %v1007 = vsel %vm285, %v268, 0
      %v1010 = vsel %vm285, %v269, 0
      %v1013 = vsel %vm285, %v270, 0
      %v1016 = vsel %vm285, %v271, 0
      %v1019 = vsel %vm285, %v272, 0
      %v1022 = vsel %vm285, %v273, 0
      %v1025 = vsel %vm285, %v274, 0
      %v1028 = vsel %vm285, %v275, 0
      %v1031 = vsel %vm285, %v276, 0
      %v1034 = vsel %vm285, %v277, 0
      %v1037 = vsel %vm285, %v278, 0
      %v1040 = vsel %vm285, %v279, 0
      %v1043 = vsel %vm285, %v280, 0
      %v1046 = vsel %vm285, %v281, 0
      %v1049 = vsel %vm285, %v282, 0
      %v1052 = vsel %vm285, %v283, 0
      %vm1054 = vcmask 1043456
      %v1056 = vsel %vm1054, %v284, 0
      %1058 = vmatprep.subr.mxu0 0.0
      %1059 = vmatpush1.msra.mxu0 %v1056
      %1060 = vmatprep.subr.mxu0 0.0
      %1061 = vmatpush1.msra.mxu0 0.0
      %1062 = vmatprep.subr.mxu0 0.0
      %1063 = vmatpush1.msra.mxu0 0.0
      %1064 = vmatprep.subr.mxu0 0.0
      %1065 = vmatpush1.msra.mxu0 0.0
      %1066 = vmatprep.subr.mxu0 0.0
      %1067 = vmatpush1.msra.mxu0 0.0
      %1068 = vmatprep.subr.mxu0 0.0
      %1069 = vmatpush1.msra.mxu0 0.0
      %1070 = vmatprep.subr.mxu0 0.0
      %1071 = vmatpush1.msra.mxu0 0.0
      %1072 = vmatprep.subr.mxu0 0.0
      %1073 = vmatpush1.msra.mxu0 0.0
      %1074 = vmatprep.subr.mxu0 0.0
      %1075 = vmatpush1.msra.mxu0 0.0
      %1076 = vmatprep.subr.mxu0 0.0
      %1077 = vmatpush1.msra.mxu0 0.0
      %1078 = vmatprep.subr.mxu0 0.0
      %1079 = vmatpush1.msra.mxu0 0.0
      %1080 = vmatprep.subr.mxu0 0.0
      %1081 = vmatpush1.msra.mxu0 0.0
      %1082 = vmatprep.subr.mxu0 0.0
      %1083 = vmatpush1.msra.mxu0 0.0
      %1084 = vmatprep.subr.mxu0 0.0
      %1085 = vmatpush1.msra.mxu0 0.0
      %1086 = vmatprep.subr.mxu0 0.0
      %1087 = vmatpush1.msra.mxu0 0.0
      %1088 = vmatprep.subr.mxu0 0.0
      %1089 = vmatpush1.msra.mxu0 0.0
      %1090 = vmatprep.subr.mxu0 0.0
      %1091 = vmatpush1.msra.mxu0 0.0
      %1092 = vmatprep.subr.mxu0 0.0
      %1093 = vmatpush1.msra.mxu0 0.0
      %1094 = vmatprep.subr.mxu0 0.0
      %1095 = vmatpush1.msra.mxu0 0.0
      %1096 = vmatprep.subr.mxu0 0.0
      %1097 = vmatpush1.msra.mxu0 0.0
      %1098 = vmatprep.subr.mxu0 0.0
      %1099 = vmatpush1.msra.mxu0 0.0
      %1100 = vmatprep.subr.mxu0 0.0
      %1101 = vmatpush1.msra.mxu0 0.0
      %1102 = vmatprep.subr.mxu0 0.0
      %1103 = vmatpush1.msra.mxu0 0.0
      %1104 = vmatprep.subr.mxu0 0.0
      %1105 = vmatpush1.msra.mxu0 0.0
      %1106 = vmatprep.subr.mxu0 0.0
      %1107 = vmatpush1.msra.mxu0 0.0
      %1108 = vmatprep.subr.mxu0 0.0
      %1109 = vmatpush1.msra.mxu0 0.0
      %1110 = vmatprep.subr.mxu0 0.0
      %1111 = vmatpush1.msra.mxu0 0.0
      %1112 = vmatprep.subr.mxu0 0.0
      %1113 = vmatpush1.msra.mxu0 0.0
      %1114 = vmatprep.subr.mxu0 0.0
      %1115 = vmatpush1.msra.mxu0 0.0
      %1116 = vmatprep.subr.mxu0 0.0
      %1117 = vmatpush1.msra.mxu0 0.0
      %1118 = vmatprep.subr.mxu0 0.0
      %1119 = vmatpush1.msra.mxu0 0.0
      %1120 = vmatprep.subr.mxu0 0.0
      %1121 = vmatpush1.msra.mxu0 0.0
      %1122 = vmatprep.mubr.f32.mxu0 0.0
      %1123 = vmatmul.mubr.f32.gmra.mrb[0].mxu0 %v287
      %v1124 = vpop.f32.mrb[0].mxu0
      %v1125 = vadd.f32 0.0, %v1124
      %v1126 = vpop.f32.mrb[0].mxu0
      %1127 = vmatprep.mubr.f32.mxu0 0.0
      %1128 = vmatmul.mubr.f32.gmra.mrb[0].mxu0 %v290
      %v1129 = vpop.f32.mrb[0].mxu0
      %v1130 = vadd.f32 0.0, %v1129
      %v1131 = vpop.f32.mrb[0].mxu0
      %1132 = vmatprep.mubr.f32.mxu0 0.0
      %1133 = vmatmul.mubr.f32.gmra.mrb[0].mxu0 %v293
      %v1134 = vpop.f32.mrb[0].mxu0
      %v1135 = vadd.f32 0.0, %v1134
      %v1136 = vpop.f32.mrb[0].mxu0
      %1137 = vmatprep.mubr.f32.mxu0 0.0
      %1138 = vmatmul.mubr.f32.gmra.mrb[0].mxu0 %v296
      %v1139 = vpop.f32.mrb[0].mxu0
      %v1140 = vadd.f32 0.0, %v1139
      %v1141 = vpop.f32.mrb[0].mxu0
      %1142 = vmatprep.mubr.f32.mxu0 0.0
      %1143 = vmatmul.mubr.f32.gmra.mrb[0].mxu0 %v299
      %v1144 = vpop.f32.mrb[0].mxu0
      %v1145 = vadd.f32 0.0, %v1144
      %v1146 = vpop.f32.mrb[0].mxu0
      %1147 = vmatprep.mubr.f32.mxu0 0.0
      %1148 = vmatmul.mubr.f32.gmra.mrb[0].mxu0 %v302
      %v1149 = vpop.f32.mrb[0].mxu0
      %v1150 = vadd.f32 0.0, %v1149
      %v1151 = vpop.f32.mrb[0].mxu0
      %1152 = vmatprep.mubr.f32.mxu0 0.0
      %1153 = vmatmul.mubr.f32.gmra.mrb[0].mxu0 %v305
      %v1154 = vpop.f32.mrb[0].mxu0
      %v1155 = vadd.f32 0.0, %v1154
      %v1156 = vpop.f32.mrb[0].mxu0
      %1157 = vmatprep.mubr.f32.mxu0 0.0
      %1158 = vmatmul.mubr.f32.gmra.mrb[0].mxu0 %v308
      %v1159 = vpop.f32.mrb[0].mxu0
      %v1160 = vadd.f32 0.0, %v1159
      %v1161 = vpop.f32.mrb[0].mxu0
      %1162 = vmatprep.mubr.f32.mxu0 0.0
      %1163 = vmatmul.mubr.f32.gmra.mrb[0].mxu0 %v311
      %v1164 = vpop.f32.mrb[0].mxu0
      %v1165 = vadd.f32 0.0, %v1164
      %v1166 = vpop.f32.mrb[0].mxu0
      %1167 = vmatprep.mubr.f32.mxu0 0.0
      %1168 = vmatmul.mubr.f32.gmra.mrb[0].mxu0 %v314
      %v1169 = vpop.f32.mrb[0].mxu0
      %v1170 = vadd.f32 0.0, %v1169
      %v1171 = vpop.f32.mrb[0].mxu0
      %1172 = vmatprep.mubr.f32.mxu0 0.0
      %1173 = vmatmul.mubr.f32.gmra.mrb[0].mxu0 %v317
      %v1174 = vpop.f32.mrb[0].mxu0
      %v1175 = vadd.f32 0.0, %v1174
      %v1176 = vpop.f32.mrb[0].mxu0
      %1177 = vmatprep.mubr.f32.mxu0 0.0
      %1178 = vmatmul.mubr.f32.gmra.mrb[0].mxu0 %v320
      %v1179 = vpop.f32.mrb[0].mxu0
      %v1180 = vadd.f32 0.0, %v1179
      %v1181 = vpop.f32.mrb[0].mxu0
      %1182 = vmatprep.mubr.f32.mxu0 0.0
      %1183 = vmatmul.mubr.f32.gmra.mrb[0].mxu0 %v323
      %v1184 = vpop.f32.mrb[0].mxu0
      %v1185 = vadd.f32 0.0, %v1184
      %v1186 = vpop.f32.mrb[0].mxu0
      %1187 = vmatprep.mubr.f32.mxu0 0.0
      %1188 = vmatmul.mubr.f32.gmra.mrb[0].mxu0 %v326
      %v1189 = vpop.f32.mrb[0].mxu0
      %v1190 = vadd.f32 0.0, %v1189
      %v1191 = vpop.f32.mrb[0].mxu0
      %1192 = vmatprep.mubr.f32.mxu0 0.0
      %1193 = vmatmul.mubr.f32.gmra.mrb[0].mxu0 %v329
      %v1194 = vpop.f32.mrb[0].mxu0
      %v1195 = vadd.f32 0.0, %v1194
      %v1196 = vpop.f32.mrb[0].mxu0
      %1197 = vmatprep.mubr.f32.mxu0 0.0
      %1198 = vmatmul.mubr.f32.gmra.mrb[0].mxu0 %v332
      %v1199 = vpop.f32.mrb[0].mxu0
      %v1200 = vadd.f32 0.0, %v1199
      %v1201 = vpop.f32.mrb[0].mxu0
      %1202 = vmatprep.mubr.f32.mxu0 0.0
      %1203 = vmatmul.mubr.f32.gmra.mrb[0].mxu0 %v335
      %v1204 = vpop.f32.mrb[0].mxu0
      %v1205 = vadd.f32 0.0, %v1204
      %v1206 = vpop.f32.mrb[0].mxu0
      %1207 = vmatprep.mubr.f32.mxu0 0.0
      %1208 = vmatmul.mubr.f32.gmra.mrb[0].mxu0 %v338
      %v1209 = vpop.f32.mrb[0].mxu0
      %v1210 = vadd.f32 0.0, %v1209
      %v1211 = vpop.f32.mrb[0].mxu0
      %1212 = vmatprep.mubr.f32.mxu0 0.0
      %1213 = vmatmul.mubr.f32.gmra.mrb[0].mxu0 %v341
      %v1214 = vpop.f32.mrb[0].mxu0
      %v1215 = vadd.f32 0.0, %v1214
      %v1216 = vpop.f32.mrb[0].mxu0
      %1217 = vmatprep.mubr.f32.mxu0 0.0
      %1218 = vmatmul.mubr.f32.gmra.mrb[0].mxu0 %v344
      %v1219 = vpop.f32.mrb[0].mxu0
      %v1220 = vadd.f32 0.0, %v1219
      %v1221 = vpop.f32.mrb[0].mxu0
      %1222 = vmatprep.mubr.f32.mxu0 0.0
      %1223 = vmatmul.mubr.f32.gmra.mrb[0].mxu0 %v347
      %v1224 = vpop.f32.mrb[0].mxu0
      %v1225 = vadd.f32 0.0, %v1224
      %v1226 = vpop.f32.mrb[0].mxu0
      %1227 = vmatprep.mubr.f32.mxu0 0.0
      %1228 = vmatmul.mubr.f32.gmra.mrb[0].mxu0 %v350
      %v1229 = vpop.f32.mrb[0].mxu0
      %v1230 = vadd.f32 0.0, %v1229
      %v1231 = vpop.f32.mrb[0].mxu0
      %1232 = vmatprep.mubr.f32.mxu0 0.0
      %1233 = vmatmul.mubr.f32.gmra.mrb[0].mxu0 %v353
      %v1234 = vpop.f32.mrb[0].mxu0
      %v1235 = vadd.f32 0.0, %v1234
      %v1236 = vpop.f32.mrb[0].mxu0
      %1237 = vmatprep.mubr.f32.mxu0 0.0
      %1238 = vmatmul.mubr.f32.gmra.mrb[0].mxu0 %v356
      %v1239 = vpop.f32.mrb[0].mxu0
      %v1240 = vadd.f32 0.0, %v1239
      %v1241 = vpop.f32.mrb[0].mxu0
      %1242 = vmatprep.mubr.f32.mxu0 0.0
      %1243 = vmatmul.mubr.f32.gmra.mrb[0].mxu0 %v359
      %v1244 = vpop.f32.mrb[0].mxu0
      %v1245 = vadd.f32 0.0, %v1244
      %v1246 = vpop.f32.mrb[0].mxu0
      %1247 = vmatprep.mubr.f32.mxu0 0.0
      %1248 = vmatmul.mubr.f32.gmra.mrb[0].mxu0 %v362
      %v1249 = vpop.f32.mrb[0].mxu0
      %v1250 = vadd.f32 0.0, %v1249
      %v1251 = vpop.f32.mrb[0].mxu0
      %1252 = vmatprep.mubr.f32.mxu0 0.0
      %1253 = vmatmul.mubr.f32.gmra.mrb[0].mxu0 %v365
      %v1254 = vpop.f32.mrb[0].mxu0
      %v1255 = vadd.f32 0.0, %v1254
      %v1256 = vpop.f32.mrb[0].mxu0
      %1257 = vmatprep.mubr.f32.mxu0 0.0
      %1258 = vmatmul.mubr.f32.gmra.mrb[0].mxu0 %v368
      %v1259 = vpop.f32.mrb[0].mxu0
      %v1260 = vadd.f32 0.0, %v1259
      %v1261 = vpop.f32.mrb[0].mxu0
      %1262 = vmatprep.mubr.f32.mxu0 0.0
      %1263 = vmatmul.mubr.f32.gmra.mrb[0].mxu0 %v371
      %v1264 = vpop.f32.mrb[0].mxu0
      %v1265 = vadd.f32 0.0, %v1264
      %v1266 = vpop.f32.mrb[0].mxu0
      %1267 = vmatprep.mubr.f32.mxu0 0.0
      %1268 = vmatmul.mubr.f32.gmra.mrb[0].mxu0 %v374
      %v1269 = vpop.f32.mrb[0].mxu0
      %v1270 = vadd.f32 0.0, %v1269
      %v1271 = vpop.f32.mrb[0].mxu0
      %1272 = vmatprep.mubr.f32.mxu0 0.0
      %1273 = vmatmul.mubr.f32.gmra.mrb[0].mxu0 %v377
      %v1274 = vpop.f32.mrb[0].mxu0
      %v1275 = vadd.f32 0.0, %v1274
      %v1276 = vpop.f32.mrb[0].mxu0
      %1277 = vmatprep.mubr.f32.mxu0 0.0
      %1278 = vmatmul.mubr.f32.gmra.mrb[0].mxu0 %v380
      %v1279 = vpop.f32.mrb[0].mxu0
      %v1280 = vadd.f32 0.0, %v1279
      %v1281 = vpop.f32.mrb[0].mxu0
      %1282 = vmatprep.mubr.f32.mxu0 0.0
      %1283 = vmatmul.mubr.f32.gmra.mrb[0].mxu0 %v383
      %v1284 = vpop.f32.mrb[0].mxu0
      %v1285 = vadd.f32 0.0, %v1284
      %v1286 = vpop.f32.mrb[0].mxu0
      %1287 = vmatprep.mubr.f32.mxu0 0.0
      %1288 = vmatmul.mubr.f32.gmra.mrb[0].mxu0 %v386
      %v1289 = vpop.f32.mrb[0].mxu0
      %v1290 = vadd.f32 0.0, %v1289
      %v1291 = vpop.f32.mrb[0].mxu0
      %1292 = vmatprep.mubr.f32.mxu0 0.0
      %1293 = vmatmul.mubr.f32.gmra.mrb[0].mxu0 %v389
      %v1294 = vpop.f32.mrb[0].mxu0
      %v1295 = vadd.f32 0.0, %v1294
      %v1296 = vpop.f32.mrb[0].mxu0
      %1297 = vmatprep.mubr.f32.mxu0 0.0
      %1298 = vmatmul.mubr.f32.gmra.mrb[0].mxu0 %v392
      %v1299 = vpop.f32.mrb[0].mxu0
      %v1300 = vadd.f32 0.0, %v1299
      %v1301 = vpop.f32.mrb[0].mxu0
      %1302 = vmatprep.mubr.f32.mxu0 0.0
      %1303 = vmatmul.mubr.f32.gmra.mrb[0].mxu0 %v395
      %v1304 = vpop.f32.mrb[0].mxu0
      %v1305 = vadd.f32 0.0, %v1304
      %v1306 = vpop.f32.mrb[0].mxu0
      %1307 = vmatprep.mubr.f32.mxu0 0.0
      %1308 = vmatmul.mubr.f32.gmra.mrb[0].mxu0 %v398
      %v1309 = vpop.f32.mrb[0].mxu0
      %v1310 = vadd.f32 0.0, %v1309
      %v1311 = vpop.f32.mrb[0].mxu0
      %1312 = vmatprep.mubr.f32.mxu0 0.0
      %1313 = vmatmul.mubr.f32.gmra.mrb[0].mxu0 %v401
      %v1314 = vpop.f32.mrb[0].mxu0
      %v1315 = vadd.f32 0.0, %v1314
      %v1316 = vpop.f32.mrb[0].mxu0
      %1317 = vmatprep.mubr.f32.mxu0 0.0
      %1318 = vmatmul.mubr.f32.gmra.mrb[0].mxu0 %v404
      %v1319 = vpop.f32.mrb[0].mxu0
      %v1320 = vadd.f32 0.0, %v1319
      %v1321 = vpop.f32.mrb[0].mxu0
      %1322 = vmatprep.mubr.f32.mxu0 0.0
      %1323 = vmatmul.mubr.f32.gmra.mrb[0].mxu0 %v407
      %v1324 = vpop.f32.mrb[0].mxu0
      %v1325 = vadd.f32 0.0, %v1324
      %v1326 = vpop.f32.mrb[0].mxu0
      %1327 = vmatprep.mubr.f32.mxu0 0.0
      %1328 = vmatmul.mubr.f32.gmra.mrb[0].mxu0 %v410
      %v1329 = vpop.f32.mrb[0].mxu0
      %v1330 = vadd.f32 0.0, %v1329
      %v1331 = vpop.f32.mrb[0].mxu0
      %1332 = vmatprep.mubr.f32.mxu0 0.0
      %1333 = vmatmul.mubr.f32.gmra.mrb[0].mxu0 %v413
      %v1334 = vpop.f32.mrb[0].mxu0
      %v1335 = vadd.f32 0.0, %v1334
      %v1336 = vpop.f32.mrb[0].mxu0
      %1337 = vmatprep.mubr.f32.mxu0 0.0
      %1338 = vmatmul.mubr.f32.gmra.mrb[0].mxu0 %v416
      %v1339 = vpop.f32.mrb[0].mxu0
      %v1340 = vadd.f32 0.0, %v1339
      %v1341 = vpop.f32.mrb[0].mxu0
      %1342 = vmatprep.mubr.f32.mxu0 0.0
      %1343 = vmatmul.mubr.f32.gmra.mrb[0].mxu0 %v419
      %v1344 = vpop.f32.mrb[0].mxu0
      %v1345 = vadd.f32 0.0, %v1344
      %v1346 = vpop.f32.mrb[0].mxu0
      %1347 = vmatprep.mubr.f32.mxu0 0.0
      %1348 = vmatmul.mubr.f32.gmra.mrb[0].mxu0 %v422
      %v1349 = vpop.f32.mrb[0].mxu0
      %v1350 = vadd.f32 0.0, %v1349
      %v1351 = vpop.f32.mrb[0].mxu0
      %1352 = vmatprep.mubr.f32.mxu0 0.0
      %1353 = vmatmul.mubr.f32.gmra.mrb[0].mxu0 %v425
      %v1354 = vpop.f32.mrb[0].mxu0
      %v1355 = vadd.f32 0.0, %v1354
      %v1356 = vpop.f32.mrb[0].mxu0
      %1357 = vmatprep.mubr.f32.mxu0 0.0
      %1358 = vmatmul.mubr.f32.gmra.mrb[0].mxu0 %v428
      %v1359 = vpop.f32.mrb[0].mxu0
      %v1360 = vadd.f32 0.0, %v1359
      %v1361 = vpop.f32.mrb[0].mxu0
      %1362 = vmatprep.mubr.f32.mxu0 0.0
      %1363 = vmatmul.mubr.f32.gmra.mrb[0].mxu0 %v431
      %v1364 = vpop.f32.mrb[0].mxu0
      %v1365 = vadd.f32 0.0, %v1364
      %v1366 = vpop.f32.mrb[0].mxu0
      %1367 = vmatprep.mubr.f32.mxu0 0.0
      %1368 = vmatmul.mubr.f32.gmra.mrb[0].mxu0 %v434
      %v1369 = vpop.f32.mrb[0].mxu0
      %v1370 = vadd.f32 0.0, %v1369
      %v1371 = vpop.f32.mrb[0].mxu0
      %1372 = vmatprep.mubr.f32.mxu0 0.0
      %1373 = vmatmul.mubr.f32.gmra.mrb[0].mxu0 %v437
      %v1374 = vpop.f32.mrb[0].mxu0
      %v1375 = vadd.f32 0.0, %v1374
      %v1376 = vpop.f32.mrb[0].mxu0
      %1377 = vmatprep.mubr.f32.mxu0 0.0
      %1378 = vmatmul.mubr.f32.gmra.mrb[0].mxu0 %v440
      %v1379 = vpop.f32.mrb[0].mxu0
      %v1380 = vadd.f32 0.0, %v1379
      %v1381 = vpop.f32.mrb[0].mxu0
      %1382 = vmatprep.mubr.f32.mxu0 0.0
      %1383 = vmatmul.mubr.f32.gmra.mrb[0].mxu0 %v443
      %v1384 = vpop.f32.mrb[0].mxu0
      %v1385 = vadd.f32 0.0, %v1384
      %v1386 = vpop.f32.mrb[0].mxu0
      %1387 = vmatprep.mubr.f32.mxu0 0.0
      %1388 = vmatmul.mubr.f32.gmra.mrb[0].mxu0 %v446
      %v1389 = vpop.f32.mrb[0].mxu0
      %v1390 = vadd.f32 0.0, %v1389
      %v1391 = vpop.f32.mrb[0].mxu0
      %1392 = vmatprep.mubr.f32.mxu0 0.0
      %1393 = vmatmul.mubr.f32.gmra.mrb[0].mxu0 %v449
      %v1394 = vpop.f32.mrb[0].mxu0
      %v1395 = vadd.f32 0.0, %v1394
      %v1396 = vpop.f32.mrb[0].mxu0
      %1397 = vmatprep.mubr.f32.mxu0 0.0
      %1398 = vmatmul.mubr.f32.gmra.mrb[0].mxu0 %v452
      %v1399 = vpop.f32.mrb[0].mxu0
      %v1400 = vadd.f32 0.0, %v1399
      %v1401 = vpop.f32.mrb[0].mxu0
      %1402 = vmatprep.mubr.f32.mxu0 0.0
      %1403 = vmatmul.mubr.f32.gmra.mrb[0].mxu0 %v455
      %v1404 = vpop.f32.mrb[0].mxu0
      %v1405 = vadd.f32 0.0, %v1404
      %v1406 = vpop.f32.mrb[0].mxu0
      %1407 = vmatprep.mubr.f32.mxu0 0.0
      %1408 = vmatmul.mubr.f32.gmra.mrb[0].mxu0 %v458
      %v1409 = vpop.f32.mrb[0].mxu0
      %v1410 = vadd.f32 0.0, %v1409
      %v1411 = vpop.f32.mrb[0].mxu0
      %1412 = vmatprep.mubr.f32.mxu0 0.0
      %1413 = vmatmul.mubr.f32.gmra.mrb[0].mxu0 %v461
      %v1414 = vpop.f32.mrb[0].mxu0
      %v1415 = vadd.f32 0.0, %v1414
      %v1416 = vpop.f32.mrb[0].mxu0
      %1417 = vmatprep.mubr.f32.mxu0 0.0
      %1418 = vmatmul.mubr.f32.gmra.mrb[0].mxu0 %v464
      %v1419 = vpop.f32.mrb[0].mxu0
      %v1420 = vadd.f32 0.0, %v1419
      %v1421 = vpop.f32.mrb[0].mxu0
      %1422 = vmatprep.mubr.f32.mxu0 0.0
      %1423 = vmatmul.mubr.f32.gmra.mrb[0].mxu0 %v467
      %v1424 = vpop.f32.mrb[0].mxu0
      %v1425 = vadd.f32 0.0, %v1424
      %v1426 = vpop.f32.mrb[0].mxu0
      %1427 = vmatprep.mubr.f32.mxu0 0.0
      %1428 = vmatmul.mubr.f32.gmra.mrb[0].mxu0 %v470
      %v1429 = vpop.f32.mrb[0].mxu0
      %v1430 = vadd.f32 0.0, %v1429
      %v1431 = vpop.f32.mrb[0].mxu0
      %1432 = vmatprep.mubr.f32.mxu0 0.0
      %1433 = vmatmul.mubr.f32.gmra.mrb[0].mxu0 %v473
      %v1434 = vpop.f32.mrb[0].mxu0
      %v1435 = vadd.f32 0.0, %v1434
      %v1436 = vpop.f32.mrb[0].mxu0
      %1437 = vmatprep.mubr.f32.mxu0 0.0
      %1438 = vmatmul.mubr.f32.gmra.mrb[0].mxu0 %v476
      %v1439 = vpop.f32.mrb[0].mxu0
      %v1440 = vadd.f32 0.0, %v1439
      %v1441 = vpop.f32.mrb[0].mxu0
      %1442 = vmatprep.mubr.f32.mxu0 0.0
      %1443 = vmatmul.mubr.f32.gmra.mrb[0].mxu0 %v479
      %v1444 = vpop.f32.mrb[0].mxu0
      %v1445 = vadd.f32 0.0, %v1444
      %v1446 = vpop.f32.mrb[0].mxu0
      %1447 = vmatprep.mubr.f32.mxu0 0.0
      %1448 = vmatmul.mubr.f32.gmra.mrb[0].mxu0 %v482
      %v1449 = vpop.f32.mrb[0].mxu0
      %v1450 = vadd.f32 0.0, %v1449
      %v1451 = vpop.f32.mrb[0].mxu0
      %1452 = vmatprep.mubr.f32.mxu0 0.0
      %1453 = vmatmul.mubr.f32.gmra.mrb[0].mxu0 %v485
      %v1454 = vpop.f32.mrb[0].mxu0
      %v1455 = vadd.f32 0.0, %v1454
      %v1456 = vpop.f32.mrb[0].mxu0
      %1457 = vmatprep.mubr.f32.mxu0 0.0
      %1458 = vmatmul.mubr.f32.gmra.mrb[0].mxu0 %v488
      %v1459 = vpop.f32.mrb[0].mxu0
      %v1460 = vadd.f32 0.0, %v1459
      %v1461 = vpop.f32.mrb[0].mxu0
      %1462 = vmatprep.mubr.f32.mxu0 0.0
      %1463 = vmatmul.mubr.f32.gmra.mrb[0].mxu0 %v491
      %v1464 = vpop.f32.mrb[0].mxu0
      %v1465 = vadd.f32 0.0, %v1464
      %v1466 = vpop.f32.mrb[0].mxu0
      %1467 = vmatprep.mubr.f32.mxu0 0.0
      %1468 = vmatmul.mubr.f32.gmra.mrb[0].mxu0 %v494
      %v1469 = vpop.f32.mrb[0].mxu0
      %v1470 = vadd.f32 0.0, %v1469
      %v1471 = vpop.f32.mrb[0].mxu0
      %1472 = vmatprep.mubr.f32.mxu0 0.0
      %1473 = vmatmul.mubr.f32.gmra.mrb[0].mxu0 %v497
      %v1474 = vpop.f32.mrb[0].mxu0
      %v1475 = vadd.f32 0.0, %v1474
      %v1476 = vpop.f32.mrb[0].mxu0
      %1477 = vmatprep.mubr.f32.mxu0 0.0
      %1478 = vmatmul.mubr.f32.gmra.mrb[0].mxu0 %v500
      %v1479 = vpop.f32.mrb[0].mxu0
      %v1480 = vadd.f32 0.0, %v1479
      %v1481 = vpop.f32.mrb[0].mxu0
      %1482 = vmatprep.mubr.f32.mxu0 0.0
      %1483 = vmatmul.mubr.f32.gmra.mrb[0].mxu0 %v503
      %v1484 = vpop.f32.mrb[0].mxu0
      %v1485 = vadd.f32 0.0, %v1484
      %v1486 = vpop.f32.mrb[0].mxu0
      %1487 = vmatprep.mubr.f32.mxu0 0.0
      %1488 = vmatmul.mubr.f32.gmra.mrb[0].mxu0 %v506
      %v1489 = vpop.f32.mrb[0].mxu0
      %v1490 = vadd.f32 0.0, %v1489
      %v1491 = vpop.f32.mrb[0].mxu0
      %1492 = vmatprep.mubr.f32.mxu0 0.0
      %1493 = vmatmul.mubr.f32.gmra.mrb[0].mxu0 %v509
      %v1494 = vpop.f32.mrb[0].mxu0
      %v1495 = vadd.f32 0.0, %v1494
      %v1496 = vpop.f32.mrb[0].mxu0
      %1497 = vmatprep.mubr.f32.mxu0 0.0
      %1498 = vmatmul.mubr.f32.gmra.mrb[0].mxu0 %v512
      %v1499 = vpop.f32.mrb[0].mxu0
      %v1500 = vadd.f32 0.0, %v1499
      %v1501 = vpop.f32.mrb[0].mxu0
      %1502 = vmatprep.mubr.f32.mxu0 0.0
      %1503 = vmatmul.mubr.f32.gmra.mrb[0].mxu0 %v515
      %v1504 = vpop.f32.mrb[0].mxu0
      %v1505 = vadd.f32 0.0, %v1504
      %v1506 = vpop.f32.mrb[0].mxu0
      %1507 = vmatprep.mubr.f32.mxu0 0.0
      %1508 = vmatmul.mubr.f32.gmra.mrb[0].mxu0 %v518
      %v1509 = vpop.f32.mrb[0].mxu0
      %v1510 = vadd.f32 0.0, %v1509
      %v1511 = vpop.f32.mrb[0].mxu0
      %1512 = vmatprep.mubr.f32.mxu0 0.0
      %1513 = vmatmul.mubr.f32.gmra.mrb[0].mxu0 %v521
      %v1514 = vpop.f32.mrb[0].mxu0
      %v1515 = vadd.f32 0.0, %v1514
      %v1516 = vpop.f32.mrb[0].mxu0
      %1517 = vmatprep.mubr.f32.mxu0 0.0
      %1518 = vmatmul.mubr.f32.gmra.mrb[0].mxu0 %v524
      %v1519 = vpop.f32.mrb[0].mxu0
      %v1520 = vadd.f32 0.0, %v1519
      %v1521 = vpop.f32.mrb[0].mxu0
      %1522 = vmatprep.mubr.f32.mxu0 0.0
      %1523 = vmatmul.mubr.f32.gmra.mrb[0].mxu0 %v527
      %v1524 = vpop.f32.mrb[0].mxu0
      %v1525 = vadd.f32 0.0, %v1524
      %v1526 = vpop.f32.mrb[0].mxu0
      %1527 = vmatprep.mubr.f32.mxu0 0.0
      %1528 = vmatmul.mubr.f32.gmra.mrb[0].mxu0 %v530
      %v1529 = vpop.f32.mrb[0].mxu0
      %v1530 = vadd.f32 0.0, %v1529
      %v1531 = vpop.f32.mrb[0].mxu0
      %1532 = vmatprep.mubr.f32.mxu0 0.0
      %1533 = vmatmul.mubr.f32.gmra.mrb[0].mxu0 %v533
      %v1534 = vpop.f32.mrb[0].mxu0
      %v1535 = vadd.f32 0.0, %v1534
      %v1536 = vpop.f32.mrb[0].mxu0
      %1537 = vmatprep.mubr.f32.mxu0 0.0
      %1538 = vmatmul.mubr.f32.gmra.mrb[0].mxu0 %v536
      %v1539 = vpop.f32.mrb[0].mxu0
      %v1540 = vadd.f32 0.0, %v1539
      %v1541 = vpop.f32.mrb[0].mxu0
      %1542 = vmatprep.mubr.f32.mxu0 0.0
      %1543 = vmatmul.mubr.f32.gmra.mrb[0].mxu0 %v539
      %v1544 = vpop.f32.mrb[0].mxu0
      %v1545 = vadd.f32 0.0, %v1544
      %v1546 = vpop.f32.mrb[0].mxu0
      %1547 = vmatprep.mubr.f32.mxu0 0.0
      %1548 = vmatmul.mubr.f32.gmra.mrb[0].mxu0 %v542
      %v1549 = vpop.f32.mrb[0].mxu0
      %v1550 = vadd.f32 0.0, %v1549
      %v1551 = vpop.f32.mrb[0].mxu0
      %1552 = vmatprep.mubr.f32.mxu0 0.0
      %1553 = vmatmul.mubr.f32.gmra.mrb[0].mxu0 %v545
      %v1554 = vpop.f32.mrb[0].mxu0
      %v1555 = vadd.f32 0.0, %v1554
      %v1556 = vpop.f32.mrb[0].mxu0
      %1557 = vmatprep.mubr.f32.mxu0 0.0
      %1558 = vmatmul.mubr.f32.gmra.mrb[0].mxu0 %v548
      %v1559 = vpop.f32.mrb[0].mxu0
      %v1560 = vadd.f32 0.0, %v1559
      %v1561 = vpop.f32.mrb[0].mxu0
      %1562 = vmatprep.mubr.f32.mxu0 0.0
      %1563 = vmatmul.mubr.f32.gmra.mrb[0].mxu0 %v551
      %v1564 = vpop.f32.mrb[0].mxu0
      %v1565 = vadd.f32 0.0, %v1564
      %v1566 = vpop.f32.mrb[0].mxu0
      %1567 = vmatprep.mubr.f32.mxu0 0.0
      %1568 = vmatmul.mubr.f32.gmra.mrb[0].mxu0 %v554
      %v1569 = vpop.f32.mrb[0].mxu0
      %v1570 = vadd.f32 0.0, %v1569
      %v1571 = vpop.f32.mrb[0].mxu0
      %1572 = vmatprep.mubr.f32.mxu0 0.0
      %1573 = vmatmul.mubr.f32.gmra.mrb[0].mxu0 %v557
      %v1574 = vpop.f32.mrb[0].mxu0
      %v1575 = vadd.f32 0.0, %v1574
      %v1576 = vpop.f32.mrb[0].mxu0
      %1577 = vmatprep.mubr.f32.mxu0 0.0
      %1578 = vmatmul.mubr.f32.gmra.mrb[0].mxu0 %v560
      %v1579 = vpop.f32.mrb[0].mxu0
      %v1580 = vadd.f32 0.0, %v1579
      %v1581 = vpop.f32.mrb[0].mxu0
      %1582 = vmatprep.mubr.f32.mxu0 0.0
      %1583 = vmatmul.mubr.f32.gmra.mrb[0].mxu0 %v563
      %v1584 = vpop.f32.mrb[0].mxu0
      %v1585 = vadd.f32 0.0, %v1584
      %v1586 = vpop.f32.mrb[0].mxu0
      %1587 = vmatprep.mubr.f32.mxu0 0.0
      %1588 = vmatmul.mubr.f32.gmra.mrb[0].mxu0 %v566
      %v1589 = vpop.f32.mrb[0].mxu0
      %v1590 = vadd.f32 0.0, %v1589
      %v1591 = vpop.f32.mrb[0].mxu0
      %1592 = vmatprep.mubr.f32.mxu0 0.0
      %1593 = vmatmul.mubr.f32.gmra.mrb[0].mxu0 %v569
      %v1594 = vpop.f32.mrb[0].mxu0
      %v1595 = vadd.f32 0.0, %v1594
      %v1596 = vpop.f32.mrb[0].mxu0
      %1597 = vmatprep.mubr.f32.mxu0 0.0
      %1598 = vmatmul.mubr.f32.gmra.mrb[0].mxu0 %v572
      %v1599 = vpop.f32.mrb[0].mxu0
      %v1600 = vadd.f32 0.0, %v1599
      %v1601 = vpop.f32.mrb[0].mxu0
      %1602 = vmatprep.mubr.f32.mxu0 0.0
      %1603 = vmatmul.mubr.f32.gmra.mrb[0].mxu0 %v575
      %v1604 = vpop.f32.mrb[0].mxu0
      %v1605 = vadd.f32 0.0, %v1604
      %v1606 = vpop.f32.mrb[0].mxu0
      %1607 = vmatprep.mubr.f32.mxu0 0.0
      %1608 = vmatmul.mubr.f32.gmra.mrb[0].mxu0 %v578
      %v1609 = vpop.f32.mrb[0].mxu0
      %v1610 = vadd.f32 0.0, %v1609
      %v1611 = vpop.f32.mrb[0].mxu0
      %1612 = vmatprep.mubr.f32.mxu0 0.0
      %1613 = vmatmul.mubr.f32.gmra.mrb[0].mxu0 %v581
      %v1614 = vpop.f32.mrb[0].mxu0
      %v1615 = vadd.f32 0.0, %v1614
      %v1616 = vpop.f32.mrb[0].mxu0
      %1617 = vmatprep.mubr.f32.mxu0 0.0
      %1618 = vmatmul.mubr.f32.gmra.mrb[0].mxu0 %v584
      %v1619 = vpop.f32.mrb[0].mxu0
      %v1620 = vadd.f32 0.0, %v1619
      %v1621 = vpop.f32.mrb[0].mxu0
      %1622 = vmatprep.mubr.f32.mxu0 0.0
      %1623 = vmatmul.mubr.f32.gmra.mrb[0].mxu0 %v587
      %v1624 = vpop.f32.mrb[0].mxu0
      %v1625 = vadd.f32 0.0, %v1624
      %v1626 = vpop.f32.mrb[0].mxu0
      %1627 = vmatprep.mubr.f32.mxu0 0.0
      %1628 = vmatmul.mubr.f32.gmra.mrb[0].mxu0 %v590
      %v1629 = vpop.f32.mrb[0].mxu0
      %v1630 = vadd.f32 0.0, %v1629
      %v1631 = vpop.f32.mrb[0].mxu0
      %1632 = vmatprep.mubr.f32.mxu0 0.0
      %1633 = vmatmul.mubr.f32.gmra.mrb[0].mxu0 %v593
      %v1634 = vpop.f32.mrb[0].mxu0
      %v1635 = vadd.f32 0.0, %v1634
      %v1636 = vpop.f32.mrb[0].mxu0
      %1637 = vmatprep.mubr.f32.mxu0 0.0
      %1638 = vmatmul.mubr.f32.gmra.mrb[0].mxu0 %v596
      %v1639 = vpop.f32.mrb[0].mxu0
      %v1640 = vadd.f32 0.0, %v1639
      %v1641 = vpop.f32.mrb[0].mxu0
      %1642 = vmatprep.mubr.f32.mxu0 0.0
      %1643 = vmatmul.mubr.f32.gmra.mrb[0].mxu0 %v599
      %v1644 = vpop.f32.mrb[0].mxu0
      %v1645 = vadd.f32 0.0, %v1644
      %v1646 = vpop.f32.mrb[0].mxu0
      %1647 = vmatprep.mubr.f32.mxu0 0.0
      %1648 = vmatmul.mubr.f32.gmra.mrb[0].mxu0 %v602
      %v1649 = vpop.f32.mrb[0].mxu0
      %v1650 = vadd.f32 0.0, %v1649
      %v1651 = vpop.f32.mrb[0].mxu0
      %1652 = vmatprep.mubr.f32.mxu0 0.0
      %1653 = vmatmul.mubr.f32.gmra.mrb[0].mxu0 %v605
      %v1654 = vpop.f32.mrb[0].mxu0
      %v1655 = vadd.f32 0.0, %v1654
      %v1656 = vpop.f32.mrb[0].mxu0
      %1657 = vmatprep.mubr.f32.mxu0 0.0
      %1658 = vmatmul.mubr.f32.gmra.mrb[0].mxu0 %v608
      %v1659 = vpop.f32.mrb[0].mxu0
      %v1660 = vadd.f32 0.0, %v1659
      %v1661 = vpop.f32.mrb[0].mxu0
      %1662 = vmatprep.mubr.f32.mxu0 0.0
      %1663 = vmatmul.mubr.f32.gmra.mrb[0].mxu0 %v611
      %v1664 = vpop.f32.mrb[0].mxu0
      %v1665 = vadd.f32 0.0, %v1664
      %v1666 = vpop.f32.mrb[0].mxu0
      %1667 = vmatprep.mubr.f32.mxu0 0.0
      %1668 = vmatmul.mubr.f32.gmra.mrb[0].mxu0 %v614
      %v1669 = vpop.f32.mrb[0].mxu0
      %v1670 = vadd.f32 0.0, %v1669
      %v1671 = vpop.f32.mrb[0].mxu0
      %1672 = vmatprep.mubr.f32.mxu0 0.0
      %1673 = vmatmul.mubr.f32.gmra.mrb[0].mxu0 %v617
      %v1674 = vpop.f32.mrb[0].mxu0
      %v1675 = vadd.f32 0.0, %v1674
      %v1676 = vpop.f32.mrb[0].mxu0
      %1677 = vmatprep.mubr.f32.mxu0 0.0
      %1678 = vmatmul.mubr.f32.gmra.mrb[0].mxu0 %v620
      %v1679 = vpop.f32.mrb[0].mxu0
      %v1680 = vadd.f32 0.0, %v1679
      %v1681 = vpop.f32.mrb[0].mxu0
      %1682 = vmatprep.mubr.f32.mxu0 0.0
      %1683 = vmatmul.mubr.f32.gmra.mrb[0].mxu0 %v623
      %v1684 = vpop.f32.mrb[0].mxu0
      %v1685 = vadd.f32 0.0, %v1684
      %v1686 = vpop.f32.mrb[0].mxu0
      %1687 = vmatprep.mubr.f32.mxu0 0.0
      %1688 = vmatmul.mubr.f32.gmra.mrb[0].mxu0 %v626
      %v1689 = vpop.f32.mrb[0].mxu0
      %v1690 = vadd.f32 0.0, %v1689
      %v1691 = vpop.f32.mrb[0].mxu0
      %1692 = vmatprep.mubr.f32.mxu0 0.0
      %1693 = vmatmul.mubr.f32.gmra.mrb[0].mxu0 %v629
      %v1694 = vpop.f32.mrb[0].mxu0
      %v1695 = vadd.f32 0.0, %v1694
      %v1696 = vpop.f32.mrb[0].mxu0
      %1697 = vmatprep.mubr.f32.mxu0 0.0
      %1698 = vmatmul.mubr.f32.gmra.mrb[0].mxu0 %v632
      %v1699 = vpop.f32.mrb[0].mxu0
      %v1700 = vadd.f32 0.0, %v1699
      %v1701 = vpop.f32.mrb[0].mxu0
      %1702 = vmatprep.mubr.f32.mxu0 0.0
      %1703 = vmatmul.mubr.f32.gmra.mrb[0].mxu0 %v635
      %v1704 = vpop.f32.mrb[0].mxu0
      %v1705 = vadd.f32 0.0, %v1704
      %v1706 = vpop.f32.mrb[0].mxu0
      %1707 = vmatprep.mubr.f32.mxu0 0.0
      %1708 = vmatmul.mubr.f32.gmra.mrb[0].mxu0 %v638
      %v1709 = vpop.f32.mrb[0].mxu0
      %v1710 = vadd.f32 0.0, %v1709
      %v1711 = vpop.f32.mrb[0].mxu0
      %1712 = vmatprep.mubr.f32.mxu0 0.0
      %1713 = vmatmul.mubr.f32.gmra.mrb[0].mxu0 %v641
      %v1714 = vpop.f32.mrb[0].mxu0
      %v1715 = vadd.f32 0.0, %v1714
      %v1716 = vpop.f32.mrb[0].mxu0
      %1717 = vmatprep.mubr.f32.mxu0 0.0
      %1718 = vmatmul.mubr.f32.gmra.mrb[0].mxu0 %v644
      %v1719 = vpop.f32.mrb[0].mxu0
      %v1720 = vadd.f32 0.0, %v1719
      %v1721 = vpop.f32.mrb[0].mxu0
      %1722 = vmatprep.mubr.f32.mxu0 0.0
      %1723 = vmatmul.mubr.f32.gmra.mrb[0].mxu0 %v647
      %v1724 = vpop.f32.mrb[0].mxu0
      %v1725 = vadd.f32 0.0, %v1724
      %v1726 = vpop.f32.mrb[0].mxu0
      %1727 = vmatprep.mubr.f32.mxu0 0.0
      %1728 = vmatmul.mubr.f32.gmra.mrb[0].mxu0 %v650
      %v1729 = vpop.f32.mrb[0].mxu0
      %v1730 = vadd.f32 0.0, %v1729
      %v1731 = vpop.f32.mrb[0].mxu0
      %1732 = vmatprep.mubr.f32.mxu0 0.0
      %1733 = vmatmul.mubr.f32.gmra.mrb[0].mxu0 %v653
      %v1734 = vpop.f32.mrb[0].mxu0
      %v1735 = vadd.f32 0.0, %v1734
      %v1736 = vpop.f32.mrb[0].mxu0
      %1737 = vmatprep.mubr.f32.mxu0 0.0
      %1738 = vmatmul.mubr.f32.gmra.mrb[0].mxu0 %v656
      %v1739 = vpop.f32.mrb[0].mxu0
      %v1740 = vadd.f32 0.0, %v1739
      %v1741 = vpop.f32.mrb[0].mxu0
      %1742 = vmatprep.mubr.f32.mxu0 0.0
      %1743 = vmatmul.mubr.f32.gmra.mrb[0].mxu0 %v659
      %v1744 = vpop.f32.mrb[0].mxu0
      %v1745 = vadd.f32 0.0, %v1744
      %v1746 = vpop.f32.mrb[0].mxu0
      %1747 = vmatprep.mubr.f32.mxu0 0.0
      %1748 = vmatmul.mubr.f32.gmra.mrb[0].mxu0 %v662
      %v1749 = vpop.f32.mrb[0].mxu0
      %v1750 = vadd.f32 0.0, %v1749
      %v1751 = vpop.f32.mrb[0].mxu0
      %1752 = vmatprep.mubr.f32.mxu0 0.0
      %1753 = vmatmul.mubr.f32.gmra.mrb[0].mxu0 %v665
      %v1754 = vpop.f32.mrb[0].mxu0
      %v1755 = vadd.f32 0.0, %v1754
      %v1756 = vpop.f32.mrb[0].mxu0
      %1757 = vmatprep.mubr.f32.mxu0 0.0
      %1758 = vmatmul.mubr.f32.gmra.mrb[0].mxu0 %v668
      %v1759 = vpop.f32.mrb[0].mxu0
      %v1760 = vadd.f32 0.0, %v1759
      %v1761 = vpop.f32.mrb[0].mxu0
      %1762 = vmatprep.mubr.f32.mxu0 0.0
      %1763 = vmatmul.mubr.f32.gmra.mrb[0].mxu0 %v671
      %v1764 = vpop.f32.mrb[0].mxu0
      %v1765 = vadd.f32 0.0, %v1764
      %v1766 = vpop.f32.mrb[0].mxu0
      %1767 = vmatprep.mubr.f32.mxu0 0.0
      %1768 = vmatmul.mubr.f32.gmra.mrb[0].mxu0 %v674
      %v1769 = vpop.f32.mrb[0].mxu0
      %v1770 = vadd.f32 0.0, %v1769
      %v1771 = vpop.f32.mrb[0].mxu0
      %1772 = vmatprep.mubr.f32.mxu0 0.0
      %1773 = vmatmul.mubr.f32.gmra.mrb[0].mxu0 %v677
      %v1774 = vpop.f32.mrb[0].mxu0
      %v1775 = vadd.f32 0.0, %v1774
      %v1776 = vpop.f32.mrb[0].mxu0
      %1777 = vmatprep.mubr.f32.mxu0 0.0
      %1778 = vmatmul.mubr.f32.gmra.mrb[0].mxu0 %v680
      %v1779 = vpop.f32.mrb[0].mxu0
      %v1780 = vadd.f32 0.0, %v1779
      %v1781 = vpop.f32.mrb[0].mxu0
      %1782 = vmatprep.mubr.f32.mxu0 0.0
      %1783 = vmatmul.mubr.f32.gmra.mrb[0].mxu0 %v683
      %v1784 = vpop.f32.mrb[0].mxu0
      %v1785 = vadd.f32 0.0, %v1784
      %v1786 = vpop.f32.mrb[0].mxu0
      %1787 = vmatprep.mubr.f32.mxu0 0.0
      %1788 = vmatmul.mubr.f32.gmra.mrb[0].mxu0 %v686
      %v1789 = vpop.f32.mrb[0].mxu0
      %v1790 = vadd.f32 0.0, %v1789
      %v1791 = vpop.f32.mrb[0].mxu0
      %1792 = vmatprep.mubr.f32.mxu0 0.0
      %1793 = vmatmul.mubr.f32.gmra.mrb[0].mxu0 %v689
      %v1794 = vpop.f32.mrb[0].mxu0
      %v1795 = vadd.f32 0.0, %v1794
      %v1796 = vpop.f32.mrb[0].mxu0
      %1797 = vmatprep.mubr.f32.mxu0 0.0
      %1798 = vmatmul.mubr.f32.gmra.mrb[0].mxu0 %v692
      %v1799 = vpop.f32.mrb[0].mxu0
      %v1800 = vadd.f32 0.0, %v1799
      %v1801 = vpop.f32.mrb[0].mxu0
      %1802 = vmatprep.mubr.f32.mxu0 0.0
      %1803 = vmatmul.mubr.f32.gmra.mrb[0].mxu0 %v695
      %v1804 = vpop.f32.mrb[0].mxu0
      %v1805 = vadd.f32 0.0, %v1804
      %v1806 = vpop.f32.mrb[0].mxu0
      %1807 = vmatprep.mubr.f32.mxu0 0.0
      %1808 = vmatmul.mubr.f32.gmra.mrb[0].mxu0 %v698
      %v1809 = vpop.f32.mrb[0].mxu0
      %v1810 = vadd.f32 0.0, %v1809
      %v1811 = vpop.f32.mrb[0].mxu0
      %1812 = vmatprep.mubr.f32.mxu0 0.0
      %1813 = vmatmul.mubr.f32.gmra.mrb[0].mxu0 %v701
      %v1814 = vpop.f32.mrb[0].mxu0
      %v1815 = vadd.f32 0.0, %v1814
      %v1816 = vpop.f32.mrb[0].mxu0
      %1817 = vmatprep.mubr.f32.mxu0 0.0
      %1818 = vmatmul.mubr.f32.gmra.mrb[0].mxu0 %v704
      %v1819 = vpop.f32.mrb[0].mxu0
      %v1820 = vadd.f32 0.0, %v1819
      %v1821 = vpop.f32.mrb[0].mxu0
      %1822 = vmatprep.mubr.f32.mxu0 0.0
      %1823 = vmatmul.mubr.f32.gmra.mrb[0].mxu0 %v707
      %v1824 = vpop.f32.mrb[0].mxu0
      %v1825 = vadd.f32 0.0, %v1824
      %v1826 = vpop.f32.mrb[0].mxu0
      %1827 = vmatprep.mubr.f32.mxu0 0.0
      %1828 = vmatmul.mubr.f32.gmra.mrb[0].mxu0 %v710
      %v1829 = vpop.f32.mrb[0].mxu0
      %v1830 = vadd.f32 0.0, %v1829
      %v1831 = vpop.f32.mrb[0].mxu0
      %1832 = vmatprep.mubr.f32.mxu0 0.0
      %1833 = vmatmul.mubr.f32.gmra.mrb[0].mxu0 %v713
      %v1834 = vpop.f32.mrb[0].mxu0
      %v1835 = vadd.f32 0.0, %v1834
      %v1836 = vpop.f32.mrb[0].mxu0
      %1837 = vmatprep.mubr.f32.mxu0 0.0
      %1838 = vmatmul.mubr.f32.gmra.mrb[0].mxu0 %v716
      %v1839 = vpop.f32.mrb[0].mxu0
      %v1840 = vadd.f32 0.0, %v1839
      %v1841 = vpop.f32.mrb[0].mxu0
      %1842 = vmatprep.mubr.f32.mxu0 0.0
      %1843 = vmatmul.mubr.f32.gmra.mrb[0].mxu0 %v719
      %v1844 = vpop.f32.mrb[0].mxu0
      %v1845 = vadd.f32 0.0, %v1844
      %v1846 = vpop.f32.mrb[0].mxu0
      %1847 = vmatprep.mubr.f32.mxu0 0.0
      %1848 = vmatmul.mubr.f32.gmra.mrb[0].mxu0 %v722
      %v1849 = vpop.f32.mrb[0].mxu0
      %v1850 = vadd.f32 0.0, %v1849
      %v1851 = vpop.f32.mrb[0].mxu0
      %1852 = vmatprep.mubr.f32.mxu0 0.0
      %1853 = vmatmul.mubr.f32.gmra.mrb[0].mxu0 %v725
      %v1854 = vpop.f32.mrb[0].mxu0
      %v1855 = vadd.f32 0.0, %v1854
      %v1856 = vpop.f32.mrb[0].mxu0
      %1857 = vmatprep.mubr.f32.mxu0 0.0
      %1858 = vmatmul.mubr.f32.gmra.mrb[0].mxu0 %v728
      %v1859 = vpop.f32.mrb[0].mxu0
      %v1860 = vadd.f32 0.0, %v1859
      %v1861 = vpop.f32.mrb[0].mxu0
      %1862 = vmatprep.mubr.f32.mxu0 0.0
      %1863 = vmatmul.mubr.f32.gmra.mrb[0].mxu0 %v731
      %v1864 = vpop.f32.mrb[0].mxu0
      %v1865 = vadd.f32 0.0, %v1864
      %v1866 = vpop.f32.mrb[0].mxu0
      %1867 = vmatprep.mubr.f32.mxu0 0.0
      %1868 = vmatmul.mubr.f32.gmra.mrb[0].mxu0 %v734
      %v1869 = vpop.f32.mrb[0].mxu0
      %v1870 = vadd.f32 0.0, %v1869
      %v1871 = vpop.f32.mrb[0].mxu0
      %1872 = vmatprep.mubr.f32.mxu0 0.0
      %1873 = vmatmul.mubr.f32.gmra.mrb[0].mxu0 %v737
      %v1874 = vpop.f32.mrb[0].mxu0
      %v1875 = vadd.f32 0.0, %v1874
      %v1876 = vpop.f32.mrb[0].mxu0
      %1877 = vmatprep.mubr.f32.mxu0 0.0
      %1878 = vmatmul.mubr.f32.gmra.mrb[0].mxu0 %v740
      %v1879 = vpop.f32.mrb[0].mxu0
      %v1880 = vadd.f32 0.0, %v1879
      %v1881 = vpop.f32.mrb[0].mxu0
      %1882 = vmatprep.mubr.f32.mxu0 0.0
      %1883 = vmatmul.mubr.f32.gmra.mrb[0].mxu0 %v743
      %v1884 = vpop.f32.mrb[0].mxu0
      %v1885 = vadd.f32 0.0, %v1884
      %v1886 = vpop.f32.mrb[0].mxu0
      %1887 = vmatprep.mubr.f32.mxu0 0.0
      %1888 = vmatmul.mubr.f32.gmra.mrb[0].mxu0 %v746
      %v1889 = vpop.f32.mrb[0].mxu0
      %v1890 = vadd.f32 0.0, %v1889
      %v1891 = vpop.f32.mrb[0].mxu0
      %1892 = vmatprep.mubr.f32.mxu0 0.0
      %1893 = vmatmul.mubr.f32.gmra.mrb[0].mxu0 %v749
      %v1894 = vpop.f32.mrb[0].mxu0
      %v1895 = vadd.f32 0.0, %v1894
      %v1896 = vpop.f32.mrb[0].mxu0
      %1897 = vmatprep.mubr.f32.mxu0 0.0
      %1898 = vmatmul.mubr.f32.gmra.mrb[0].mxu0 %v752
      %v1899 = vpop.f32.mrb[0].mxu0
      %v1900 = vadd.f32 0.0, %v1899
      %v1901 = vpop.f32.mrb[0].mxu0
      %1902 = vmatprep.mubr.f32.mxu0 0.0
      %1903 = vmatmul.mubr.f32.gmra.mrb[0].mxu0 %v755
      %v1904 = vpop.f32.mrb[0].mxu0
      %v1905 = vadd.f32 0.0, %v1904
      %v1906 = vpop.f32.mrb[0].mxu0
      %1907 = vmatprep.mubr.f32.mxu0 0.0
      %1908 = vmatmul.mubr.f32.gmra.mrb[0].mxu0 %v758
      %v1909 = vpop.f32.mrb[0].mxu0
      %v1910 = vadd.f32 0.0, %v1909
      %v1911 = vpop.f32.mrb[0].mxu0
      %1912 = vmatprep.mubr.f32.mxu0 0.0
      %1913 = vmatmul.mubr.f32.gmra.mrb[0].mxu0 %v761
      %v1914 = vpop.f32.mrb[0].mxu0
      %v1915 = vadd.f32 0.0, %v1914
      %v1916 = vpop.f32.mrb[0].mxu0
      %1917 = vmatprep.mubr.f32.mxu0 0.0
      %1918 = vmatmul.mubr.f32.gmra.mrb[0].mxu0 %v764
      %v1919 = vpop.f32.mrb[0].mxu0
      %v1920 = vadd.f32 0.0, %v1919
      %v1921 = vpop.f32.mrb[0].mxu0
      %1922 = vmatprep.mubr.f32.mxu0 0.0
      %1923 = vmatmul.mubr.f32.gmra.mrb[0].mxu0 %v767
      %v1924 = vpop.f32.mrb[0].mxu0
      %v1925 = vadd.f32 0.0, %v1924
      %v1926 = vpop.f32.mrb[0].mxu0
      %1927 = vmatprep.mubr.f32.mxu0 0.0
      %1928 = vmatmul.mubr.f32.gmra.mrb[0].mxu0 %v770
      %v1929 = vpop.f32.mrb[0].mxu0
      %v1930 = vadd.f32 0.0, %v1929
      %v1931 = vpop.f32.mrb[0].mxu0
      %1932 = vmatprep.mubr.f32.mxu0 0.0
      %1933 = vmatmul.mubr.f32.gmra.mrb[0].mxu0 %v773
      %v1934 = vpop.f32.mrb[0].mxu0
      %v1935 = vadd.f32 0.0, %v1934
      %v1936 = vpop.f32.mrb[0].mxu0
      %1937 = vmatprep.mubr.f32.mxu0 0.0
      %1938 = vmatmul.mubr.f32.gmra.mrb[0].mxu0 %v776
      %v1939 = vpop.f32.mrb[0].mxu0
      %v1940 = vadd.f32 0.0, %v1939
      %v1941 = vpop.f32.mrb[0].mxu0
      %1942 = vmatprep.mubr.f32.mxu0 0.0
      %1943 = vmatmul.mubr.f32.gmra.mrb[0].mxu0 %v779
      %v1944 = vpop.f32.mrb[0].mxu0
      %v1945 = vadd.f32 0.0, %v1944
      %v1946 = vpop.f32.mrb[0].mxu0
      %1947 = vmatprep.mubr.f32.mxu0 0.0
      %1948 = vmatmul.mubr.f32.gmra.mrb[0].mxu0 %v782
      %v1949 = vpop.f32.mrb[0].mxu0
      %v1950 = vadd.f32 0.0, %v1949
      %v1951 = vpop.f32.mrb[0].mxu0
      %1952 = vmatprep.mubr.f32.mxu0 0.0
      %1953 = vmatmul.mubr.f32.gmra.mrb[0].mxu0 %v785
      %v1954 = vpop.f32.mrb[0].mxu0
      %v1955 = vadd.f32 0.0, %v1954
      %v1956 = vpop.f32.mrb[0].mxu0
      %1957 = vmatprep.mubr.f32.mxu0 0.0
      %1958 = vmatmul.mubr.f32.gmra.mrb[0].mxu0 %v788
      %v1959 = vpop.f32.mrb[0].mxu0
      %v1960 = vadd.f32 0.0, %v1959
      %v1961 = vpop.f32.mrb[0].mxu0
      %1962 = vmatprep.mubr.f32.mxu0 0.0
      %1963 = vmatmul.mubr.f32.gmra.mrb[0].mxu0 %v791
      %v1964 = vpop.f32.mrb[0].mxu0
      %v1965 = vadd.f32 0.0, %v1964
      %v1966 = vpop.f32.mrb[0].mxu0
      %1967 = vmatprep.mubr.f32.mxu0 0.0
      %1968 = vmatmul.mubr.f32.gmra.mrb[0].mxu0 %v794
      %v1969 = vpop.f32.mrb[0].mxu0
      %v1970 = vadd.f32 0.0, %v1969
      %v1971 = vpop.f32.mrb[0].mxu0
      %1972 = vmatprep.mubr.f32.mxu0 0.0
      %1973 = vmatmul.mubr.f32.gmra.mrb[0].mxu0 %v797
      %v1974 = vpop.f32.mrb[0].mxu0
      %v1975 = vadd.f32 0.0, %v1974
      %v1976 = vpop.f32.mrb[0].mxu0
      %1977 = vmatprep.mubr.f32.mxu0 0.0
      %1978 = vmatmul.mubr.f32.gmra.mrb[0].mxu0 %v800
      %v1979 = vpop.f32.mrb[0].mxu0
      %v1980 = vadd.f32 0.0, %v1979
      %v1981 = vpop.f32.mrb[0].mxu0
      %1982 = vmatprep.mubr.f32.mxu0 0.0
      %1983 = vmatmul.mubr.f32.gmra.mrb[0].mxu0 %v803
      %v1984 = vpop.f32.mrb[0].mxu0
      %v1985 = vadd.f32 0.0, %v1984
      %v1986 = vpop.f32.mrb[0].mxu0
      %1987 = vmatprep.mubr.f32.mxu0 0.0
      %1988 = vmatmul.mubr.f32.gmra.mrb[0].mxu0 %v806
      %v1989 = vpop.f32.mrb[0].mxu0
      %v1990 = vadd.f32 0.0, %v1989
      %v1991 = vpop.f32.mrb[0].mxu0
      %1992 = vmatprep.mubr.f32.mxu0 0.0
      %1993 = vmatmul.mubr.f32.gmra.mrb[0].mxu0 %v809
      %v1994 = vpop.f32.mrb[0].mxu0
      %v1995 = vadd.f32 0.0, %v1994
      %v1996 = vpop.f32.mrb[0].mxu0
      %1997 = vmatprep.mubr.f32.mxu0 0.0
      %1998 = vmatmul.mubr.f32.gmra.mrb[0].mxu0 %v812
      %v1999 = vpop.f32.mrb[0].mxu0
      %v2000 = vadd.f32 0.0, %v1999
      %v2001 = vpop.f32.mrb[0].mxu0
      %2002 = vmatprep.mubr.f32.mxu0 0.0
      %2003 = vmatmul.mubr.f32.gmra.mrb[0].mxu0 %v815
      %v2004 = vpop.f32.mrb[0].mxu0
      %v2005 = vadd.f32 0.0, %v2004
      %v2006 = vpop.f32.mrb[0].mxu0
      %2007 = vmatprep.mubr.f32.mxu0 0.0
      %2008 = vmatmul.mubr.f32.gmra.mrb[0].mxu0 %v818
      %v2009 = vpop.f32.mrb[0].mxu0
      %v2010 = vadd.f32 0.0, %v2009
      %v2011 = vpop.f32.mrb[0].mxu0
      %2012 = vmatprep.mubr.f32.mxu0 0.0
      %2013 = vmatmul.mubr.f32.gmra.mrb[0].mxu0 %v821
      %v2014 = vpop.f32.mrb[0].mxu0
      %v2015 = vadd.f32 0.0, %v2014
      %v2016 = vpop.f32.mrb[0].mxu0
      %2017 = vmatprep.mubr.f32.mxu0 0.0
      %2018 = vmatmul.mubr.f32.gmra.mrb[0].mxu0 %v824
      %v2019 = vpop.f32.mrb[0].mxu0
      %v2020 = vadd.f32 0.0, %v2019
      %v2021 = vpop.f32.mrb[0].mxu0
      %2022 = vmatprep.mubr.f32.mxu0 0.0
      %2023 = vmatmul.mubr.f32.gmra.mrb[0].mxu0 %v827
      %v2024 = vpop.f32.mrb[0].mxu0
      %v2025 = vadd.f32 0.0, %v2024
      %v2026 = vpop.f32.mrb[0].mxu0
      %2027 = vmatprep.mubr.f32.mxu0 0.0
      %2028 = vmatmul.mubr.f32.gmra.mrb[0].mxu0 %v830
      %v2029 = vpop.f32.mrb[0].mxu0
      %v2030 = vadd.f32 0.0, %v2029
      %v2031 = vpop.f32.mrb[0].mxu0
      %2032 = vmatprep.mubr.f32.mxu0 0.0
      %2033 = vmatmul.mubr.f32.gmra.mrb[0].mxu0 %v833
      %v2034 = vpop.f32.mrb[0].mxu0
      %v2035 = vadd.f32 0.0, %v2034
      %v2036 = vpop.f32.mrb[0].mxu0
      %2037 = vmatprep.mubr.f32.mxu0 0.0
      %2038 = vmatmul.mubr.f32.gmra.mrb[0].mxu0 %v836
      %v2039 = vpop.f32.mrb[0].mxu0
      %v2040 = vadd.f32 0.0, %v2039
      %v2041 = vpop.f32.mrb[0].mxu0
      %2042 = vmatprep.mubr.f32.mxu0 0.0
      %2043 = vmatmul.mubr.f32.gmra.mrb[0].mxu0 %v839
      %v2044 = vpop.f32.mrb[0].mxu0
      %v2045 = vadd.f32 0.0, %v2044
      %v2046 = vpop.f32.mrb[0].mxu0
      %2047 = vmatprep.mubr.f32.mxu0 0.0
      %2048 = vmatmul.mubr.f32.gmra.mrb[0].mxu0 %v842
      %v2049 = vpop.f32.mrb[0].mxu0
      %v2050 = vadd.f32 0.0, %v2049
      %v2051 = vpop.f32.mrb[0].mxu0
      %2052 = vmatprep.mubr.f32.mxu0 0.0
      %2053 = vmatmul.mubr.f32.gmra.mrb[0].mxu0 %v845
      %v2054 = vpop.f32.mrb[0].mxu0
      %v2055 = vadd.f32 0.0, %v2054
      %v2056 = vpop.f32.mrb[0].mxu0
      %2057 = vmatprep.mubr.f32.mxu0 0.0
      %2058 = vmatmul.mubr.f32.gmra.mrb[0].mxu0 %v848
      %v2059 = vpop.f32.mrb[0].mxu0
      %v2060 = vadd.f32 0.0, %v2059
      %v2061 = vpop.f32.mrb[0].mxu0
      %2062 = vmatprep.mubr.f32.mxu0 0.0
      %2063 = vmatmul.mubr.f32.gmra.mrb[0].mxu0 %v851
      %v2064 = vpop.f32.mrb[0].mxu0
      %v2065 = vadd.f32 0.0, %v2064
      %v2066 = vpop.f32.mrb[0].mxu0
      %2067 = vmatprep.mubr.f32.mxu0 0.0
      %2068 = vmatmul.mubr.f32.gmra.mrb[0].mxu0 %v854
      %v2069 = vpop.f32.mrb[0].mxu0
      %v2070 = vadd.f32 0.0, %v2069
      %v2071 = vpop.f32.mrb[0].mxu0
      %2072 = vmatprep.mubr.f32.mxu0 0.0
      %2073 = vmatmul.mubr.f32.gmra.mrb[0].mxu0 %v857
      %v2074 = vpop.f32.mrb[0].mxu0
      %v2075 = vadd.f32 0.0, %v2074
      %v2076 = vpop.f32.mrb[0].mxu0
      %2077 = vmatprep.mubr.f32.mxu0 0.0
      %2078 = vmatmul.mubr.f32.gmra.mrb[0].mxu0 %v860
      %v2079 = vpop.f32.mrb[0].mxu0
      %v2080 = vadd.f32 0.0, %v2079
      %v2081 = vpop.f32.mrb[0].mxu0
      %2082 = vmatprep.mubr.f32.mxu0 0.0
      %2083 = vmatmul.mubr.f32.gmra.mrb[0].mxu0 %v863
      %v2084 = vpop.f32.mrb[0].mxu0
      %v2085 = vadd.f32 0.0, %v2084
      %v2086 = vpop.f32.mrb[0].mxu0
      %2087 = vmatprep.mubr.f32.mxu0 0.0
      %2088 = vmatmul.mubr.f32.gmra.mrb[0].mxu0 %v866
      %v2089 = vpop.f32.mrb[0].mxu0
      %v2090 = vadd.f32 0.0, %v2089
      %v2091 = vpop.f32.mrb[0].mxu0
      %2092 = vmatprep.mubr.f32.mxu0 0.0
      %2093 = vmatmul.mubr.f32.gmra.mrb[0].mxu0 %v869
      %v2094 = vpop.f32.mrb[0].mxu0
      %v2095 = vadd.f32 0.0, %v2094
      %v2096 = vpop.f32.mrb[0].mxu0
      %2097 = vmatprep.mubr.f32.mxu0 0.0
      %2098 = vmatmul.mubr.f32.gmra.mrb[0].mxu0 %v872
      %v2099 = vpop.f32.mrb[0].mxu0
      %v2100 = vadd.f32 0.0, %v2099
      %v2101 = vpop.f32.mrb[0].mxu0
      %2102 = vmatprep.mubr.f32.mxu0 0.0
      %2103 = vmatmul.mubr.f32.gmra.mrb[0].mxu0 %v875
      %v2104 = vpop.f32.mrb[0].mxu0
      %v2105 = vadd.f32 0.0, %v2104
      %v2106 = vpop.f32.mrb[0].mxu0
      %2107 = vmatprep.mubr.f32.mxu0 0.0
      %2108 = vmatmul.mubr.f32.gmra.mrb[0].mxu0 %v878
      %v2109 = vpop.f32.mrb[0].mxu0
      %v2110 = vadd.f32 0.0, %v2109
      %v2111 = vpop.f32.mrb[0].mxu0
      %2112 = vmatprep.mubr.f32.mxu0 0.0
      %2113 = vmatmul.mubr.f32.gmra.mrb[0].mxu0 %v881
      %v2114 = vpop.f32.mrb[0].mxu0
      %v2115 = vadd.f32 0.0, %v2114
      %v2116 = vpop.f32.mrb[0].mxu0
      %2117 = vmatprep.mubr.f32.mxu0 0.0
      %2118 = vmatmul.mubr.f32.gmra.mrb[0].mxu0 %v884
      %v2119 = vpop.f32.mrb[0].mxu0
      %v2120 = vadd.f32 0.0, %v2119
      %v2121 = vpop.f32.mrb[0].mxu0
      %2122 = vmatprep.mubr.f32.mxu0 0.0
      %2123 = vmatmul.mubr.f32.gmra.mrb[0].mxu0 %v887
      %v2124 = vpop.f32.mrb[0].mxu0
      %v2125 = vadd.f32 0.0, %v2124
      %v2126 = vpop.f32.mrb[0].mxu0
      %2127 = vmatprep.mubr.f32.mxu0 0.0
      %2128 = vmatmul.mubr.f32.gmra.mrb[0].mxu0 %v890
      %v2129 = vpop.f32.mrb[0].mxu0
      %v2130 = vadd.f32 0.0, %v2129
      %v2131 = vpop.f32.mrb[0].mxu0
      %2132 = vmatprep.mubr.f32.mxu0 0.0
      %2133 = vmatmul.mubr.f32.gmra.mrb[0].mxu0 %v893
      %v2134 = vpop.f32.mrb[0].mxu0
      %v2135 = vadd.f32 0.0, %v2134
      %v2136 = vpop.f32.mrb[0].mxu0
      %2137 = vmatprep.mubr.f32.mxu0 0.0
      %2138 = vmatmul.mubr.f32.gmra.mrb[0].mxu0 %v896
      %v2139 = vpop.f32.mrb[0].mxu0
      %v2140 = vadd.f32 0.0, %v2139
      %v2141 = vpop.f32.mrb[0].mxu0
      %2142 = vmatprep.mubr.f32.mxu0 0.0
      %2143 = vmatmul.mubr.f32.gmra.mrb[0].mxu0 %v899
      %v2144 = vpop.f32.mrb[0].mxu0
      %v2145 = vadd.f32 0.0, %v2144
      %v2146 = vpop.f32.mrb[0].mxu0
      %2147 = vmatprep.mubr.f32.mxu0 0.0
      %2148 = vmatmul.mubr.f32.gmra.mrb[0].mxu0 %v902
      %v2149 = vpop.f32.mrb[0].mxu0
      %v2150 = vadd.f32 0.0, %v2149
      %v2151 = vpop.f32.mrb[0].mxu0
      %2152 = vmatprep.mubr.f32.mxu0 0.0
      %2153 = vmatmul.mubr.f32.gmra.mrb[0].mxu0 %v905
      %v2154 = vpop.f32.mrb[0].mxu0
      %v2155 = vadd.f32 0.0, %v2154
      %v2156 = vpop.f32.mrb[0].mxu0
      %2157 = vmatprep.mubr.f32.mxu0 0.0
      %2158 = vmatmul.mubr.f32.gmra.mrb[0].mxu0 %v908
      %v2159 = vpop.f32.mrb[0].mxu0
      %v2160 = vadd.f32 0.0, %v2159
      %v2161 = vpop.f32.mrb[0].mxu0
      %2162 = vmatprep.mubr.f32.mxu0 0.0
      %2163 = vmatmul.mubr.f32.gmra.mrb[0].mxu0 %v911
      %v2164 = vpop.f32.mrb[0].mxu0
      %v2165 = vadd.f32 0.0, %v2164
      %v2166 = vpop.f32.mrb[0].mxu0
      %2167 = vmatprep.mubr.f32.mxu0 0.0
      %2168 = vmatmul.mubr.f32.gmra.mrb[0].mxu0 %v914
      %v2169 = vpop.f32.mrb[0].mxu0
      %v2170 = vadd.f32 0.0, %v2169
      %v2171 = vpop.f32.mrb[0].mxu0
      %2172 = vmatprep.mubr.f32.mxu0 0.0
      %2173 = vmatmul.mubr.f32.gmra.mrb[0].mxu0 %v917
      %v2174 = vpop.f32.mrb[0].mxu0
      %v2175 = vadd.f32 0.0, %v2174
      %v2176 = vpop.f32.mrb[0].mxu0
      %2177 = vmatprep.mubr.f32.mxu0 0.0
      %2178 = vmatmul.mubr.f32.gmra.mrb[0].mxu0 %v920
      %v2179 = vpop.f32.mrb[0].mxu0
      %v2180 = vadd.f32 0.0, %v2179
      %v2181 = vpop.f32.mrb[0].mxu0
      %2182 = vmatprep.mubr.f32.mxu0 0.0
      %2183 = vmatmul.mubr.f32.gmra.mrb[0].mxu0 %v923
      %v2184 = vpop.f32.mrb[0].mxu0
      %v2185 = vadd.f32 0.0, %v2184
      %v2186 = vpop.f32.mrb[0].mxu0
      %2187 = vmatprep.mubr.f32.mxu0 0.0
      %2188 = vmatmul.mubr.f32.gmra.mrb[0].mxu0 %v926
      %v2189 = vpop.f32.mrb[0].mxu0
      %v2190 = vadd.f32 0.0, %v2189
      %v2191 = vpop.f32.mrb[0].mxu0
      %2192 = vmatprep.mubr.f32.mxu0 0.0
      %2193 = vmatmul.mubr.f32.gmra.mrb[0].mxu0 %v929
      %v2194 = vpop.f32.mrb[0].mxu0
      %v2195 = vadd.f32 0.0, %v2194
      %v2196 = vpop.f32.mrb[0].mxu0
      %2197 = vmatprep.mubr.f32.mxu0 0.0
      %2198 = vmatmul.mubr.f32.gmra.mrb[0].mxu0 %v932
      %v2199 = vpop.f32.mrb[0].mxu0
      %v2200 = vadd.f32 0.0, %v2199
      %v2201 = vpop.f32.mrb[0].mxu0
      %2202 = vmatprep.mubr.f32.mxu0 0.0
      %2203 = vmatmul.mubr.f32.gmra.mrb[0].mxu0 %v935
      %v2204 = vpop.f32.mrb[0].mxu0
      %v2205 = vadd.f32 0.0, %v2204
      %v2206 = vpop.f32.mrb[0].mxu0
      %2207 = vmatprep.mubr.f32.mxu0 0.0
      %2208 = vmatmul.mubr.f32.gmra.mrb[0].mxu0 %v938
      %v2209 = vpop.f32.mrb[0].mxu0
      %v2210 = vadd.f32 0.0, %v2209
      %v2211 = vpop.f32.mrb[0].mxu0
      %2212 = vmatprep.mubr.f32.mxu0 0.0
      %2213 = vmatmul.mubr.f32.gmra.mrb[0].mxu0 %v941
      %v2214 = vpop.f32.mrb[0].mxu0
      %v2215 = vadd.f32 0.0, %v2214
      %v2216 = vpop.f32.mrb[0].mxu0
      %2217 = vmatprep.mubr.f32.mxu0 0.0
      %2218 = vmatmul.mubr.f32.gmra.mrb[0].mxu0 %v944
      %v2219 = vpop.f32.mrb[0].mxu0
      %v2220 = vadd.f32 0.0, %v2219
      %v2221 = vpop.f32.mrb[0].mxu0
      %2222 = vmatprep.mubr.f32.mxu0 0.0
      %2223 = vmatmul.mubr.f32.gmra.mrb[0].mxu0 %v947
      %v2224 = vpop.f32.mrb[0].mxu0
      %v2225 = vadd.f32 0.0, %v2224
      %v2226 = vpop.f32.mrb[0].mxu0
      %2227 = vmatprep.mubr.f32.mxu0 0.0
      %2228 = vmatmul.mubr.f32.gmra.mrb[0].mxu0 %v950
      %v2229 = vpop.f32.mrb[0].mxu0
      %v2230 = vadd.f32 0.0, %v2229
      %v2231 = vpop.f32.mrb[0].mxu0
      %2232 = vmatprep.mubr.f32.mxu0 0.0
      %2233 = vmatmul.mubr.f32.gmra.mrb[0].mxu0 %v953
      %v2234 = vpop.f32.mrb[0].mxu0
      %v2235 = vadd.f32 0.0, %v2234
      %v2236 = vpop.f32.mrb[0].mxu0
      %2237 = vmatprep.mubr.f32.mxu0 0.0
      %2238 = vmatmul.mubr.f32.gmra.mrb[0].mxu0 %v956
      %v2239 = vpop.f32.mrb[0].mxu0
      %v2240 = vadd.f32 0.0, %v2239
      %v2241 = vpop.f32.mrb[0].mxu0
      %2242 = vmatprep.mubr.f32.mxu0 0.0
      %2243 = vmatmul.mubr.f32.gmra.mrb[0].mxu0 %v959
      %v2244 = vpop.f32.mrb[0].mxu0
      %v2245 = vadd.f32 0.0, %v2244
      %v2246 = vpop.f32.mrb[0].mxu0
      %2247 = vmatprep.mubr.f32.mxu0 0.0
      %2248 = vmatmul.mubr.f32.gmra.mrb[0].mxu0 %v962
      %v2249 = vpop.f32.mrb[0].mxu0
      %v2250 = vadd.f32 0.0, %v2249
      %v2251 = vpop.f32.mrb[0].mxu0
      %2252 = vmatprep.mubr.f32.mxu0 0.0
      %2253 = vmatmul.mubr.f32.gmra.mrb[0].mxu0 %v965
      %v2254 = vpop.f32.mrb[0].mxu0
      %v2255 = vadd.f32 0.0, %v2254
      %v2256 = vpop.f32.mrb[0].mxu0
      %2257 = vmatprep.mubr.f32.mxu0 0.0
      %2258 = vmatmul.mubr.f32.gmra.mrb[0].mxu0 %v968
      %v2259 = vpop.f32.mrb[0].mxu0
      %v2260 = vadd.f32 0.0, %v2259
      %v2261 = vpop.f32.mrb[0].mxu0
      %2262 = vmatprep.mubr.f32.mxu0 0.0
      %2263 = vmatmul.mubr.f32.gmra.mrb[0].mxu0 %v971
      %v2264 = vpop.f32.mrb[0].mxu0
      %v2265 = vadd.f32 0.0, %v2264
      %v2266 = vpop.f32.mrb[0].mxu0
      %2267 = vmatprep.mubr.f32.mxu0 0.0
      %2268 = vmatmul.mubr.f32.gmra.mrb[0].mxu0 %v974
      %v2269 = vpop.f32.mrb[0].mxu0
      %v2270 = vadd.f32 0.0, %v2269
      %v2271 = vpop.f32.mrb[0].mxu0
      %2272 = vmatprep.mubr.f32.mxu0 0.0
      %2273 = vmatmul.mubr.f32.gmra.mrb[0].mxu0 %v977
      %v2274 = vpop.f32.mrb[0].mxu0
      %v2275 = vadd.f32 0.0, %v2274
      %v2276 = vpop.f32.mrb[0].mxu0
      %2277 = vmatprep.mubr.f32.mxu0 0.0
      %2278 = vmatmul.mubr.f32.gmra.mrb[0].mxu0 %v980
      %v2279 = vpop.f32.mrb[0].mxu0
      %v2280 = vadd.f32 0.0, %v2279
      %v2281 = vpop.f32.mrb[0].mxu0
      %2282 = vmatprep.mubr.f32.mxu0 0.0
      %2283 = vmatmul.mubr.f32.gmra.mrb[0].mxu0 %v983
      %v2284 = vpop.f32.mrb[0].mxu0
      %v2285 = vadd.f32 0.0, %v2284
      %v2286 = vpop.f32.mrb[0].mxu0
      %2287 = vmatprep.mubr.f32.mxu0 0.0
      %2288 = vmatmul.mubr.f32.gmra.mrb[0].mxu0 %v986
      %v2289 = vpop.f32.mrb[0].mxu0
      %v2290 = vadd.f32 0.0, %v2289
      %v2291 = vpop.f32.mrb[0].mxu0
      %2292 = vmatprep.mubr.f32.mxu0 0.0
      %2293 = vmatmul.mubr.f32.gmra.mrb[0].mxu0 %v989
      %v2294 = vpop.f32.mrb[0].mxu0
      %v2295 = vadd.f32 0.0, %v2294
      %v2296 = vpop.f32.mrb[0].mxu0
      %2297 = vmatprep.mubr.f32.mxu0 0.0
      %2298 = vmatmul.mubr.f32.gmra.mrb[0].mxu0 %v992
      %v2299 = vpop.f32.mrb[0].mxu0
      %v2300 = vadd.f32 0.0, %v2299
      %v2301 = vpop.f32.mrb[0].mxu0
      %2302 = vmatprep.mubr.f32.mxu0 0.0
      %2303 = vmatmul.mubr.f32.gmra.mrb[0].mxu0 %v995
      %v2304 = vpop.f32.mrb[0].mxu0
      %v2305 = vadd.f32 0.0, %v2304
      %v2306 = vpop.f32.mrb[0].mxu0
      %2307 = vmatprep.mubr.f32.mxu0 0.0
      %2308 = vmatmul.mubr.f32.gmra.mrb[0].mxu0 %v998
      %v2309 = vpop.f32.mrb[0].mxu0
      %v2310 = vadd.f32 0.0, %v2309
      %v2311 = vpop.f32.mrb[0].mxu0
      %2312 = vmatprep.mubr.f32.mxu0 0.0
      %2313 = vmatmul.mubr.f32.gmra.mrb[0].mxu0 %v1001
      %v2314 = vpop.f32.mrb[0].mxu0
      %v2315 = vadd.f32 0.0, %v2314
      %v2316 = vpop.f32.mrb[0].mxu0
      %2317 = vmatprep.mubr.f32.mxu0 0.0
      %2318 = vmatmul.mubr.f32.gmra.mrb[0].mxu0 %v1004
      %v2319 = vpop.f32.mrb[0].mxu0
      %v2320 = vadd.f32 0.0, %v2319
      %v2321 = vpop.f32.mrb[0].mxu0
      %2322 = vmatprep.mubr.f32.mxu0 0.0
      %2323 = vmatmul.mubr.f32.gmra.mrb[0].mxu0 %v1007
      %v2324 = vpop.f32.mrb[0].mxu0
      %v2325 = vadd.f32 0.0, %v2324
      %v2326 = vpop.f32.mrb[0].mxu0
      %2327 = vmatprep.mubr.f32.mxu0 0.0
      %2328 = vmatmul.mubr.f32.gmra.mrb[0].mxu0 %v1010
      %v2329 = vpop.f32.mrb[0].mxu0
      %v2330 = vadd.f32 0.0, %v2329
      %v2331 = vpop.f32.mrb[0].mxu0
      %2332 = vmatprep.mubr.f32.mxu0 0.0
      %2333 = vmatmul.mubr.f32.gmra.mrb[0].mxu0 %v1013
      %v2334 = vpop.f32.mrb[0].mxu0
      %v2335 = vadd.f32 0.0, %v2334
      %v2336 = vpop.f32.mrb[0].mxu0
      %2337 = vmatprep.mubr.f32.mxu0 0.0
      %2338 = vmatmul.mubr.f32.gmra.mrb[0].mxu0 %v1016
      %v2339 = vpop.f32.mrb[0].mxu0
      %v2340 = vadd.f32 0.0, %v2339
      %v2341 = vpop.f32.mrb[0].mxu0
      %2342 = vmatprep.mubr.f32.mxu0 0.0
      %2343 = vmatmul.mubr.f32.gmra.mrb[0].mxu0 %v1019
      %v2344 = vpop.f32.mrb[0].mxu0
      %v2345 = vadd.f32 0.0, %v2344
      %v2346 = vpop.f32.mrb[0].mxu0
      %2347 = vmatprep.mubr.f32.mxu0 0.0
      %2348 = vmatmul.mubr.f32.gmra.mrb[0].mxu0 %v1022
      %v2349 = vpop.f32.mrb[0].mxu0
      %v2350 = vadd.f32 0.0, %v2349
      %v2351 = vpop.f32.mrb[0].mxu0
      %2352 = vmatprep.mubr.f32.mxu0 0.0
      %2353 = vmatmul.mubr.f32.gmra.mrb[0].mxu0 %v1025
      %v2354 = vpop.f32.mrb[0].mxu0
      %v2355 = vadd.f32 0.0, %v2354
      %v2356 = vpop.f32.mrb[0].mxu0
      %2357 = vmatprep.mubr.f32.mxu0 0.0
      %2358 = vmatmul.mubr.f32.gmra.mrb[0].mxu0 %v1028
      %v2359 = vpop.f32.mrb[0].mxu0
      %v2360 = vadd.f32 0.0, %v2359
      %v2361 = vpop.f32.mrb[0].mxu0
      %2362 = vmatprep.mubr.f32.mxu0 0.0
      %2363 = vmatmul.mubr.f32.gmra.mrb[0].mxu0 %v1031
      %v2364 = vpop.f32.mrb[0].mxu0
      %v2365 = vadd.f32 0.0, %v2364
      %v2366 = vpop.f32.mrb[0].mxu0
      %2367 = vmatprep.mubr.f32.mxu0 0.0
      %2368 = vmatmul.mubr.f32.gmra.mrb[0].mxu0 %v1034
      %v2369 = vpop.f32.mrb[0].mxu0
      %v2370 = vadd.f32 0.0, %v2369
      %v2371 = vpop.f32.mrb[0].mxu0
      %2372 = vmatprep.mubr.f32.mxu0 0.0
      %2373 = vmatmul.mubr.f32.gmra.mrb[0].mxu0 %v1037
      %v2374 = vpop.f32.mrb[0].mxu0
      %v2375 = vadd.f32 0.0, %v2374
      %v2376 = vpop.f32.mrb[0].mxu0
      %2377 = vmatprep.mubr.f32.mxu0 0.0
      %2378 = vmatmul.mubr.f32.gmra.mrb[0].mxu0 %v1040
      %v2379 = vpop.f32.mrb[0].mxu0
      %v2380 = vadd.f32 0.0, %v2379
      %v2381 = vpop.f32.mrb[0].mxu0
      %2382 = vmatprep.mubr.f32.mxu0 0.0
      %2383 = vmatmul.mubr.f32.gmra.mrb[0].mxu0 %v1043
      %v2384 = vpop.f32.mrb[0].mxu0
      %v2385 = vadd.f32 0.0, %v2384
      %v2386 = vpop.f32.mrb[0].mxu0
      %2387 = vmatprep.mubr.f32.mxu0 0.0
      %2388 = vmatmul.mubr.f32.gmra.mrb[0].mxu0 %v1046
      %v2389 = vpop.f32.mrb[0].mxu0
      %v2390 = vadd.f32 0.0, %v2389
      %v2391 = vpop.f32.mrb[0].mxu0
      %2392 = vmatprep.mubr.f32.mxu0 0.0
      %2393 = vmatmul.mubr.f32.gmra.mrb[0].mxu0 %v1049
      %v2394 = vpop.f32.mrb[0].mxu0
      %v2395 = vadd.f32 0.0, %v2394
      %v2396 = vpop.f32.mrb[0].mxu0
      %2397 = vmatprep.mubr.f32.mxu0 0.0
      %2398 = vmatmul.mubr.f32.gmra.mrb[0].mxu0 %v1052
      %v2399 = vpop.f32.mrb[0].mxu0
      %v2400 = vadd.f32 0.0, %v2399
      %v2401 = vpop.f32.mrb[0].mxu0
      %2402 = vdwg.mxu0
      %v2403 = vmax.f32 %v1125, 0.0
      %v2404 = vmax.f32 %v1130, 0.0
      %v2405 = vmax.f32 %v1135, 0.0
      %v2406 = vmax.f32 %v1140, 0.0
      %v2407 = vmax.f32 %v1145, 0.0
      %v2408 = vmax.f32 %v1150, 0.0
      %v2409 = vmax.f32 %v1155, 0.0
      %v2410 = vmax.f32 %v1160, 0.0
      %v2411 = vmax.f32 %v1165, 0.0
      %v2412 = vmax.f32 %v1170, 0.0
      %v2413 = vmax.f32 %v1175, 0.0
      %v2414 = vmax.f32 %v1180, 0.0
      %v2415 = vmax.f32 %v1185, 0.0
      %v2416 = vmax.f32 %v1190, 0.0
      %v2417 = vmax.f32 %v1195, 0.0
      %v2418 = vmax.f32 %v1200, 0.0
      %v2419 = vmax.f32 %v1205, 0.0
      %v2420 = vmax.f32 %v1210, 0.0
      %v2421 = vmax.f32 %v1215, 0.0
      %v2422 = vmax.f32 %v1220, 0.0
      %v2423 = vmax.f32 %v1225, 0.0
      %v2424 = vmax.f32 %v1230, 0.0
      %v2425 = vmax.f32 %v1235, 0.0
      %v2426 = vmax.f32 %v1240, 0.0
      %v2427 = vmax.f32 %v1245, 0.0
      %v2428 = vmax.f32 %v1250, 0.0
      %v2429 = vmax.f32 %v1255, 0.0
      %v2430 = vmax.f32 %v1260, 0.0
      %v2431 = vmax.f32 %v1265, 0.0
      %v2432 = vmax.f32 %v1270, 0.0
      %v2433 = vmax.f32 %v1275, 0.0
      %v2434 = vmax.f32 %v1280, 0.0
      %v2435 = vmax.f32 %v1285, 0.0
      %v2436 = vmax.f32 %v1290, 0.0
      %v2437 = vmax.f32 %v1295, 0.0
      %v2438 = vmax.f32 %v1300, 0.0
      %v2439 = vmax.f32 %v1305, 0.0
      %v2440 = vmax.f32 %v1310, 0.0
      %v2441 = vmax.f32 %v1315, 0.0
      %v2442 = vmax.f32 %v1320, 0.0
      %v2443 = vmax.f32 %v1325, 0.0
      %v2444 = vmax.f32 %v1330, 0.0
      %v2445 = vmax.f32 %v1335, 0.0
      %v2446 = vmax.f32 %v1340, 0.0
      %v2447 = vmax.f32 %v1345, 0.0
      %v2448 = vmax.f32 %v1350, 0.0
      %v2449 = vmax.f32 %v1355, 0.0
      %v2450 = vmax.f32 %v1360, 0.0
      %v2451 = vmax.f32 %v1365, 0.0
      %v2452 = vmax.f32 %v1370, 0.0
      %v2453 = vmax.f32 %v1375, 0.0
      %v2454 = vmax.f32 %v1380, 0.0
      %v2455 = vmax.f32 %v1385, 0.0
      %v2456 = vmax.f32 %v1390, 0.0
      %v2457 = vmax.f32 %v1395, 0.0
      %v2458 = vmax.f32 %v1400, 0.0
      %v2459 = vmax.f32 %v1405, 0.0
      %v2460 = vmax.f32 %v1410, 0.0
      %v2461 = vmax.f32 %v1415, 0.0
      %v2462 = vmax.f32 %v1420, 0.0
      %v2463 = vmax.f32 %v1425, 0.0
      %v2464 = vmax.f32 %v1430, 0.0
      %v2465 = vmax.f32 %v1435, 0.0
      %v2466 = vmax.f32 %v1440, 0.0
      %v2467 = vmax.f32 %v1445, 0.0
      %v2468 = vmax.f32 %v1450, 0.0
      %v2469 = vmax.f32 %v1455, 0.0
      %v2470 = vmax.f32 %v1460, 0.0
      %v2471 = vmax.f32 %v1465, 0.0
      %v2472 = vmax.f32 %v1470, 0.0
      %v2473 = vmax.f32 %v1475, 0.0
      %v2474 = vmax.f32 %v1480, 0.0
      %v2475 = vmax.f32 %v1485, 0.0
      %v2476 = vmax.f32 %v1490, 0.0
      %v2477 = vmax.f32 %v1495, 0.0
      %v2478 = vmax.f32 %v1500, 0.0
      %v2479 = vmax.f32 %v1505, 0.0
      %v2480 = vmax.f32 %v1510, 0.0
      %v2481 = vmax.f32 %v1515, 0.0
      %v2482 = vmax.f32 %v1520, 0.0
      %v2483 = vmax.f32 %v1525, 0.0
      %v2484 = vmax.f32 %v1530, 0.0
      %v2485 = vmax.f32 %v1535, 0.0
      %v2486 = vmax.f32 %v1540, 0.0
      %v2487 = vmax.f32 %v1545, 0.0
      %v2488 = vmax.f32 %v1550, 0.0
      %v2489 = vmax.f32 %v1555, 0.0
      %v2490 = vmax.f32 %v1560, 0.0
      %v2491 = vmax.f32 %v1565, 0.0
      %v2492 = vmax.f32 %v1570, 0.0
      %v2493 = vmax.f32 %v1575, 0.0
      %v2494 = vmax.f32 %v1580, 0.0
      %v2495 = vmax.f32 %v1585, 0.0
      %v2496 = vmax.f32 %v1590, 0.0
      %v2497 = vmax.f32 %v1595, 0.0
      %v2498 = vmax.f32 %v1600, 0.0
      %v2499 = vmax.f32 %v1605, 0.0
      %v2500 = vmax.f32 %v1610, 0.0
      %v2501 = vmax.f32 %v1615, 0.0
      %v2502 = vmax.f32 %v1620, 0.0
      %v2503 = vmax.f32 %v1625, 0.0
      %v2504 = vmax.f32 %v1630, 0.0
      %v2505 = vmax.f32 %v1635, 0.0
      %v2506 = vmax.f32 %v1640, 0.0
      %v2507 = vmax.f32 %v1645, 0.0
      %v2508 = vmax.f32 %v1650, 0.0
      %v2509 = vmax.f32 %v1655, 0.0
      %v2510 = vmax.f32 %v1660, 0.0
      %v2511 = vmax.f32 %v1665, 0.0
      %v2512 = vmax.f32 %v1670, 0.0
      %v2513 = vmax.f32 %v1675, 0.0
      %v2514 = vmax.f32 %v1680, 0.0
      %v2515 = vmax.f32 %v1685, 0.0
      %v2516 = vmax.f32 %v1690, 0.0
      %v2517 = vmax.f32 %v1695, 0.0
      %v2518 = vmax.f32 %v1700, 0.0
      %v2519 = vmax.f32 %v1705, 0.0
      %v2520 = vmax.f32 %v1710, 0.0
      %v2521 = vmax.f32 %v1715, 0.0
      %v2522 = vmax.f32 %v1720, 0.0
      %v2523 = vmax.f32 %v1725, 0.0
      %v2524 = vmax.f32 %v1730, 0.0
      %v2525 = vmax.f32 %v1735, 0.0
      %v2526 = vmax.f32 %v1740, 0.0
      %v2527 = vmax.f32 %v1745, 0.0
      %v2528 = vmax.f32 %v1750, 0.0
      %v2529 = vmax.f32 %v1755, 0.0
      %v2530 = vmax.f32 %v1760, 0.0
      %v2531 = vmax.f32 %v1765, 0.0
      %v2532 = vmax.f32 %v1770, 0.0
      %v2533 = vmax.f32 %v1775, 0.0
      %v2534 = vmax.f32 %v1780, 0.0
      %v2535 = vmax.f32 %v1785, 0.0
      %v2536 = vmax.f32 %v1790, 0.0
      %v2537 = vmax.f32 %v1795, 0.0
      %v2538 = vmax.f32 %v1800, 0.0
      %v2539 = vmax.f32 %v1805, 0.0
      %v2540 = vmax.f32 %v1810, 0.0
      %v2541 = vmax.f32 %v1815, 0.0
      %v2542 = vmax.f32 %v1820, 0.0
      %v2543 = vmax.f32 %v1825, 0.0
      %v2544 = vmax.f32 %v1830, 0.0
      %v2545 = vmax.f32 %v1835, 0.0
      %v2546 = vmax.f32 %v1840, 0.0
      %v2547 = vmax.f32 %v1845, 0.0
      %v2548 = vmax.f32 %v1850, 0.0
      %v2549 = vmax.f32 %v1855, 0.0
      %v2550 = vmax.f32 %v1860, 0.0
      %v2551 = vmax.f32 %v1865, 0.0
      %v2552 = vmax.f32 %v1870, 0.0
      %v2553 = vmax.f32 %v1875, 0.0
      %v2554 = vmax.f32 %v1880, 0.0
      %v2555 = vmax.f32 %v1885, 0.0
      %v2556 = vmax.f32 %v1890, 0.0
      %v2557 = vmax.f32 %v1895, 0.0
      %v2558 = vmax.f32 %v1900, 0.0
      %v2559 = vmax.f32 %v1905, 0.0
      %v2560 = vmax.f32 %v1910, 0.0
      %v2561 = vmax.f32 %v1915, 0.0
      %v2562 = vmax.f32 %v1920, 0.0
      %v2563 = vmax.f32 %v1925, 0.0
      %v2564 = vmax.f32 %v1930, 0.0
      %v2565 = vmax.f32 %v1935, 0.0
      %v2566 = vmax.f32 %v1940, 0.0
      %v2567 = vmax.f32 %v1945, 0.0
      %v2568 = vmax.f32 %v1950, 0.0
      %v2569 = vmax.f32 %v1955, 0.0
      %v2570 = vmax.f32 %v1960, 0.0
      %v2571 = vmax.f32 %v1965, 0.0
      %v2572 = vmax.f32 %v1970, 0.0
      %v2573 = vmax.f32 %v1975, 0.0
      %v2574 = vmax.f32 %v1980, 0.0
      %v2575 = vmax.f32 %v1985, 0.0
      %v2576 = vmax.f32 %v1990, 0.0
      %v2577 = vmax.f32 %v1995, 0.0
      %v2578 = vmax.f32 %v2000, 0.0
      %v2579 = vmax.f32 %v2005, 0.0
      %v2580 = vmax.f32 %v2010, 0.0
      %v2581 = vmax.f32 %v2015, 0.0
      %v2582 = vmax.f32 %v2020, 0.0
      %v2583 = vmax.f32 %v2025, 0.0
      %v2584 = vmax.f32 %v2030, 0.0
      %v2585 = vmax.f32 %v2035, 0.0
      %v2586 = vmax.f32 %v2040, 0.0
      %v2587 = vmax.f32 %v2045, 0.0
      %v2588 = vmax.f32 %v2050, 0.0
      %v2589 = vmax.f32 %v2055, 0.0
      %v2590 = vmax.f32 %v2060, 0.0
      %v2591 = vmax.f32 %v2065, 0.0
      %v2592 = vmax.f32 %v2070, 0.0
      %v2593 = vmax.f32 %v2075, 0.0
      %v2594 = vmax.f32 %v2080, 0.0
      %v2595 = vmax.f32 %v2085, 0.0
      %v2596 = vmax.f32 %v2090, 0.0
      %v2597 = vmax.f32 %v2095, 0.0
      %v2598 = vmax.f32 %v2100, 0.0
      %v2599 = vmax.f32 %v2105, 0.0
      %v2600 = vmax.f32 %v2110, 0.0
      %v2601 = vmax.f32 %v2115, 0.0
      %v2602 = vmax.f32 %v2120, 0.0
      %v2603 = vmax.f32 %v2125, 0.0
      %v2604 = vmax.f32 %v2130, 0.0
      %v2605 = vmax.f32 %v2135, 0.0
      %v2606 = vmax.f32 %v2140, 0.0
      %v2607 = vmax.f32 %v2145, 0.0
      %v2608 = vmax.f32 %v2150, 0.0
      %v2609 = vmax.f32 %v2155, 0.0
      %v2610 = vmax.f32 %v2160, 0.0
      %v2611 = vmax.f32 %v2165, 0.0
      %v2612 = vmax.f32 %v2170, 0.0
      %v2613 = vmax.f32 %v2175, 0.0
      %v2614 = vmax.f32 %v2180, 0.0
      %v2615 = vmax.f32 %v2185, 0.0
      %v2616 = vmax.f32 %v2190, 0.0
      %v2617 = vmax.f32 %v2195, 0.0
      %v2618 = vmax.f32 %v2200, 0.0
      %v2619 = vmax.f32 %v2205, 0.0
      %v2620 = vmax.f32 %v2210, 0.0
      %v2621 = vmax.f32 %v2215, 0.0
      %v2622 = vmax.f32 %v2220, 0.0
      %v2623 = vmax.f32 %v2225, 0.0
      %v2624 = vmax.f32 %v2230, 0.0
      %v2625 = vmax.f32 %v2235, 0.0
      %v2626 = vmax.f32 %v2240, 0.0
      %v2627 = vmax.f32 %v2245, 0.0
      %v2628 = vmax.f32 %v2250, 0.0
      %v2629 = vmax.f32 %v2255, 0.0
      %v2630 = vmax.f32 %v2260, 0.0
      %v2631 = vmax.f32 %v2265, 0.0
      %v2632 = vmax.f32 %v2270, 0.0
      %v2633 = vmax.f32 %v2275, 0.0
      %v2634 = vmax.f32 %v2280, 0.0
      %v2635 = vmax.f32 %v2285, 0.0
      %v2636 = vmax.f32 %v2290, 0.0
      %v2637 = vmax.f32 %v2295, 0.0
      %v2638 = vmax.f32 %v2300, 0.0
      %v2639 = vmax.f32 %v2305, 0.0
      %v2640 = vmax.f32 %v2310, 0.0
      %v2641 = vmax.f32 %v2315, 0.0
      %v2642 = vmax.f32 %v2320, 0.0
      %v2643 = vmax.f32 %v2325, 0.0
      %v2644 = vmax.f32 %v2330, 0.0
      %v2645 = vmax.f32 %v2335, 0.0
      %v2646 = vmax.f32 %v2340, 0.0
      %v2647 = vmax.f32 %v2345, 0.0
      %v2648 = vmax.f32 %v2350, 0.0
      %v2649 = vmax.f32 %v2355, 0.0
      %v2650 = vmax.f32 %v2360, 0.0
      %v2651 = vmax.f32 %v2365, 0.0
      %v2652 = vmax.f32 %v2370, 0.0
      %v2653 = vmax.f32 %v2375, 0.0
      %v2654 = vmax.f32 %v2380, 0.0
      %v2655 = vmax.f32 %v2385, 0.0
      %v2656 = vmax.f32 %v2390, 0.0
      %v2657 = vmax.f32 %v2395, 0.0
      %v2658 = vmax.f32 %v2400, 0.0
      %v2659 = vadd.f32 %v2403, %v2404
      %v2660 = vadd.f32 %v2659, %v2405
      %v2661 = vadd.f32 %v2660, %v2406
      %v2662 = vadd.f32 %v2661, %v2407
      %v2663 = vadd.f32 %v2662, %v2408
      %v2664 = vadd.f32 %v2663, %v2409
      %v2665 = vadd.f32 %v2664, %v2410
      %v2666 = vadd.f32 %v2665, %v2411
      %v2667 = vadd.f32 %v2666, %v2412
      %v2668 = vadd.f32 %v2667, %v2413
      %v2669 = vadd.f32 %v2668, %v2414
      %v2670 = vadd.f32 %v2669, %v2415
      %v2671 = vadd.f32 %v2670, %v2416
      %v2672 = vadd.f32 %v2671, %v2417
      %v2673 = vadd.f32 %v2672, %v2418
      %v2674 = vadd.f32 %v2673, %v2419
      %v2675 = vadd.f32 %v2674, %v2420
      %v2676 = vadd.f32 %v2675, %v2421
      %v2677 = vadd.f32 %v2676, %v2422
      %v2678 = vadd.f32 %v2677, %v2423
      %v2679 = vadd.f32 %v2678, %v2424
      %v2680 = vadd.f32 %v2679, %v2425
      %v2681 = vadd.f32 %v2680, %v2426
      %v2682 = vadd.f32 %v2681, %v2427
      %v2683 = vadd.f32 %v2682, %v2428
      %v2684 = vadd.f32 %v2683, %v2429
      %v2685 = vadd.f32 %v2684, %v2430
      %v2686 = vadd.f32 %v2685, %v2431
      %v2687 = vadd.f32 %v2686, %v2432
      %v2688 = vadd.f32 %v2687, %v2433
      %v2689 = vadd.f32 %v2688, %v2434
      %v2690 = vrot.slane %v2689, 4
      %v2691 = vadd.f32 %v2689, %v2690
      %v2692 = vrot.slane %v2691, 2
      %v2693 = vadd.f32 %v2691, %v2692
      %v2694 = vrot.slane %v2693, 1
      %v2695 = vadd.f32 %v2693, %v2694
      %v2696 = vadd.f32 %v2435, %v2436
      %v2697 = vadd.f32 %v2696, %v2437
      %v2698 = vadd.f32 %v2697, %v2438
      %v2699 = vadd.f32 %v2698, %v2439
      %v2700 = vadd.f32 %v2699, %v2440
      %v2701 = vadd.f32 %v2700, %v2441
      %v2702 = vadd.f32 %v2701, %v2442
      %v2703 = vadd.f32 %v2702, %v2443
      %v2704 = vadd.f32 %v2703, %v2444
      %v2705 = vadd.f32 %v2704, %v2445
      %v2706 = vadd.f32 %v2705, %v2446
      %v2707 = vadd.f32 %v2706, %v2447
      %v2708 = vadd.f32 %v2707, %v2448
      %v2709 = vadd.f32 %v2708, %v2449
      %v2710 = vadd.f32 %v2709, %v2450
      %v2711 = vadd.f32 %v2710, %v2451
      %v2712 = vadd.f32 %v2711, %v2452
      %v2713 = vadd.f32 %v2712, %v2453
      %v2714 = vadd.f32 %v2713, %v2454
      %v2715 = vadd.f32 %v2714, %v2455
      %v2716 = vadd.f32 %v2715, %v2456
      %v2717 = vadd.f32 %v2716, %v2457
      %v2718 = vadd.f32 %v2717, %v2458
      %v2719 = vadd.f32 %v2718, %v2459
      %v2720 = vadd.f32 %v2719, %v2460
      %v2721 = vadd.f32 %v2720, %v2461
      %v2722 = vadd.f32 %v2721, %v2462
      %v2723 = vadd.f32 %v2722, %v2463
      %v2724 = vadd.f32 %v2723, %v2464
      %v2725 = vadd.f32 %v2724, %v2465
      %v2726 = vadd.f32 %v2725, %v2466
      %v2727 = vrot.slane %v2726, 4
      %v2728 = vadd.f32 %v2726, %v2727
      %v2729 = vrot.slane %v2728, 2
      %v2730 = vadd.f32 %v2728, %v2729
      %v2731 = vrot.slane %v2730, 1
      %v2732 = vadd.f32 %v2730, %v2731
      %v2733 = vadd.f32 %v2467, %v2468
      %v2734 = vadd.f32 %v2733, %v2469
      %v2735 = vadd.f32 %v2734, %v2470
      %v2736 = vadd.f32 %v2735, %v2471
      %v2737 = vadd.f32 %v2736, %v2472
      %v2738 = vadd.f32 %v2737, %v2473
      %v2739 = vadd.f32 %v2738, %v2474
      %v2740 = vadd.f32 %v2739, %v2475
      %v2741 = vadd.f32 %v2740, %v2476
      %v2742 = vadd.f32 %v2741, %v2477
      %v2743 = vadd.f32 %v2742, %v2478
      %v2744 = vadd.f32 %v2743, %v2479
      %v2745 = vadd.f32 %v2744, %v2480
      %v2746 = vadd.f32 %v2745, %v2481
      %v2747 = vadd.f32 %v2746, %v2482
      %v2748 = vadd.f32 %v2747, %v2483
      %v2749 = vadd.f32 %v2748, %v2484
      %v2750 = vadd.f32 %v2749, %v2485
      %v2751 = vadd.f32 %v2750, %v2486
      %v2752 = vadd.f32 %v2751, %v2487
      %v2753 = vadd.f32 %v2752, %v2488
      %v2754 = vadd.f32 %v2753, %v2489
      %v2755 = vadd.f32 %v2754, %v2490
      %v2756 = vadd.f32 %v2755, %v2491
      %v2757 = vadd.f32 %v2756, %v2492
      %v2758 = vadd.f32 %v2757, %v2493
      %v2759 = vadd.f32 %v2758, %v2494
      %v2760 = vadd.f32 %v2759, %v2495
      %v2761 = vadd.f32 %v2760, %v2496
      %v2762 = vadd.f32 %v2761, %v2497
      %v2763 = vadd.f32 %v2762, %v2498
      %v2764 = vrot.slane %v2763, 4
      %v2765 = vadd.f32 %v2763, %v2764
      %v2766 = vrot.slane %v2765, 2
      %v2767 = vadd.f32 %v2765, %v2766
      %v2768 = vrot.slane %v2767, 1
      %v2769 = vadd.f32 %v2767, %v2768
      %v2770 = vadd.f32 %v2499, %v2500
      %v2771 = vadd.f32 %v2770, %v2501
      %v2772 = vadd.f32 %v2771, %v2502
      %v2773 = vadd.f32 %v2772, %v2503
      %v2774 = vadd.f32 %v2773, %v2504
      %v2775 = vadd.f32 %v2774, %v2505
      %v2776 = vadd.f32 %v2775, %v2506
      %v2777 = vadd.f32 %v2776, %v2507
      %v2778 = vadd.f32 %v2777, %v2508
      %v2779 = vadd.f32 %v2778, %v2509
      %v2780 = vadd.f32 %v2779, %v2510
      %v2781 = vadd.f32 %v2780, %v2511
      %v2782 = vadd.f32 %v2781, %v2512
      %v2783 = vadd.f32 %v2782, %v2513
      %v2784 = vadd.f32 %v2783, %v2514
      %v2785 = vadd.f32 %v2784, %v2515
      %v2786 = vadd.f32 %v2785, %v2516
      %v2787 = vadd.f32 %v2786, %v2517
      %v2788 = vadd.f32 %v2787, %v2518
      %v2789 = vadd.f32 %v2788, %v2519
      %v2790 = vadd.f32 %v2789, %v2520
      %v2791 = vadd.f32 %v2790, %v2521
      %v2792 = vadd.f32 %v2791, %v2522
      %v2793 = vadd.f32 %v2792, %v2523
      %v2794 = vadd.f32 %v2793, %v2524
      %v2795 = vadd.f32 %v2794, %v2525
      %v2796 = vadd.f32 %v2795, %v2526
      %v2797 = vadd.f32 %v2796, %v2527
      %v2798 = vadd.f32 %v2797, %v2528
      %v2799 = vadd.f32 %v2798, %v2529
      %v2800 = vadd.f32 %v2799, %v2530
      %v2801 = vrot.slane %v2800, 4
      %v2802 = vadd.f32 %v2800, %v2801
      %v2803 = vrot.slane %v2802, 2
      %v2804 = vadd.f32 %v2802, %v2803
      %v2805 = vrot.slane %v2804, 1
      %v2806 = vadd.f32 %v2804, %v2805
      %v2807 = vadd.f32 %v2531, %v2532
      %v2808 = vadd.f32 %v2807, %v2533
      %v2809 = vadd.f32 %v2808, %v2534
      %v2810 = vadd.f32 %v2809, %v2535
      %v2811 = vadd.f32 %v2810, %v2536
      %v2812 = vadd.f32 %v2811, %v2537
      %v2813 = vadd.f32 %v2812, %v2538
      %v2814 = vadd.f32 %v2813, %v2539
      %v2815 = vadd.f32 %v2814, %v2540
      %v2816 = vadd.f32 %v2815, %v2541
      %v2817 = vadd.f32 %v2816, %v2542
      %v2818 = vadd.f32 %v2817, %v2543
      %v2819 = vadd.f32 %v2818, %v2544
      %v2820 = vadd.f32 %v2819, %v2545
      %v2821 = vadd.f32 %v2820, %v2546
      %v2822 = vadd.f32 %v2821, %v2547
      %v2823 = vadd.f32 %v2822, %v2548
      %v2824 = vadd.f32 %v2823, %v2549
      %v2825 = vadd.f32 %v2824, %v2550
      %v2826 = vadd.f32 %v2825, %v2551
      %v2827 = vadd.f32 %v2826, %v2552
      %v2828 = vadd.f32 %v2827, %v2553
      %v2829 = vadd.f32 %v2828, %v2554
      %v2830 = vadd.f32 %v2829, %v2555
      %v2831 = vadd.f32 %v2830, %v2556
      %v2832 = vadd.f32 %v2831, %v2557
      %v2833 = vadd.f32 %v2832, %v2558
      %v2834 = vadd.f32 %v2833, %v2559
      %v2835 = vadd.f32 %v2834, %v2560
      %v2836 = vadd.f32 %v2835, %v2561
      %v2837 = vadd.f32 %v2836, %v2562
      %v2838 = vrot.slane %v2837, 4
      %v2839 = vadd.f32 %v2837, %v2838
      %v2840 = vrot.slane %v2839, 2
      %v2841 = vadd.f32 %v2839, %v2840
      %v2842 = vrot.slane %v2841, 1
      %v2843 = vadd.f32 %v2841, %v2842
      %v2844 = vadd.f32 %v2563, %v2564
      %v2845 = vadd.f32 %v2844, %v2565
      %v2846 = vadd.f32 %v2845, %v2566
      %v2847 = vadd.f32 %v2846, %v2567
      %v2848 = vadd.f32 %v2847, %v2568
      %v2849 = vadd.f32 %v2848, %v2569
      %v2850 = vadd.f32 %v2849, %v2570
      %v2851 = vadd.f32 %v2850, %v2571
      %v2852 = vadd.f32 %v2851, %v2572
      %v2853 = vadd.f32 %v2852, %v2573
      %v2854 = vadd.f32 %v2853, %v2574
      %v2855 = vadd.f32 %v2854, %v2575
      %v2856 = vadd.f32 %v2855, %v2576
      %v2857 = vadd.f32 %v2856, %v2577
      %v2858 = vadd.f32 %v2857, %v2578
      %v2859 = vadd.f32 %v2858, %v2579
      %v2860 = vadd.f32 %v2859, %v2580
      %v2861 = vadd.f32 %v2860, %v2581
      %v2862 = vadd.f32 %v2861, %v2582
      %v2863 = vadd.f32 %v2862, %v2583
      %v2864 = vadd.f32 %v2863, %v2584
      %v2865 = vadd.f32 %v2864, %v2585
      %v2866 = vadd.f32 %v2865, %v2586
      %v2867 = vadd.f32 %v2866, %v2587
      %v2868 = vadd.f32 %v2867, %v2588
      %v2869 = vadd.f32 %v2868, %v2589
      %v2870 = vadd.f32 %v2869, %v2590
      %v2871 = vadd.f32 %v2870, %v2591
      %v2872 = vadd.f32 %v2871, %v2592
      %v2873 = vadd.f32 %v2872, %v2593
      %v2874 = vadd.f32 %v2873, %v2594
      %v2875 = vrot.slane %v2874, 4
      %v2876 = vadd.f32 %v2874, %v2875
      %v2877 = vrot.slane %v2876, 2
      %v2878 = vadd.f32 %v2876, %v2877
      %v2879 = vrot.slane %v2878, 1
      %v2880 = vadd.f32 %v2878, %v2879
      %v2881 = vadd.f32 %v2595, %v2596
      %v2882 = vadd.f32 %v2881, %v2597
      %v2883 = vadd.f32 %v2882, %v2598
      %v2884 = vadd.f32 %v2883, %v2599
      %v2885 = vadd.f32 %v2884, %v2600
      %v2886 = vadd.f32 %v2885, %v2601
      %v2887 = vadd.f32 %v2886, %v2602
      %v2888 = vadd.f32 %v2887, %v2603
      %v2889 = vadd.f32 %v2888, %v2604
      %v2890 = vadd.f32 %v2889, %v2605
      %v2891 = vadd.f32 %v2890, %v2606
      %v2892 = vadd.f32 %v2891, %v2607
      %v2893 = vadd.f32 %v2892, %v2608
      %v2894 = vadd.f32 %v2893, %v2609
      %v2895 = vadd.f32 %v2894, %v2610
      %v2896 = vadd.f32 %v2895, %v2611
      %v2897 = vadd.f32 %v2896, %v2612
      %v2898 = vadd.f32 %v2897, %v2613
      %v2899 = vadd.f32 %v2898, %v2614
      %v2900 = vadd.f32 %v2899, %v2615
      %v2901 = vadd.f32 %v2900, %v2616
      %v2902 = vadd.f32 %v2901, %v2617
      %v2903 = vadd.f32 %v2902, %v2618
      %v2904 = vadd.f32 %v2903, %v2619
      %v2905 = vadd.f32 %v2904, %v2620
      %v2906 = vadd.f32 %v2905, %v2621
      %v2907 = vadd.f32 %v2906, %v2622
      %v2908 = vadd.f32 %v2907, %v2623
      %v2909 = vadd.f32 %v2908, %v2624
      %v2910 = vadd.f32 %v2909, %v2625
      %v2911 = vadd.f32 %v2910, %v2626
      %v2912 = vrot.slane %v2911, 4
      %v2913 = vadd.f32 %v2911, %v2912
      %v2914 = vrot.slane %v2913, 2
      %v2915 = vadd.f32 %v2913, %v2914
      %v2916 = vrot.slane %v2915, 1
      %v2917 = vadd.f32 %v2915, %v2916
      %v2918 = vadd.f32 %v2627, %v2628
      %v2919 = vadd.f32 %v2918, %v2629
      %v2920 = vadd.f32 %v2919, %v2630
      %v2921 = vadd.f32 %v2920, %v2631
      %v2922 = vadd.f32 %v2921, %v2632
      %v2923 = vadd.f32 %v2922, %v2633
      %v2924 = vadd.f32 %v2923, %v2634
      %v2925 = vadd.f32 %v2924, %v2635
      %v2926 = vadd.f32 %v2925, %v2636
      %v2927 = vadd.f32 %v2926, %v2637
      %v2928 = vadd.f32 %v2927, %v2638
      %v2929 = vadd.f32 %v2928, %v2639
      %v2930 = vadd.f32 %v2929, %v2640
      %v2931 = vadd.f32 %v2930, %v2641
      %v2932 = vadd.f32 %v2931, %v2642
      %v2933 = vadd.f32 %v2932, %v2643
      %v2934 = vadd.f32 %v2933, %v2644
      %v2935 = vadd.f32 %v2934, %v2645
      %v2936 = vadd.f32 %v2935, %v2646
      %v2937 = vadd.f32 %v2936, %v2647
      %v2938 = vadd.f32 %v2937, %v2648
      %v2939 = vadd.f32 %v2938, %v2649
      %v2940 = vadd.f32 %v2939, %v2650
      %v2941 = vadd.f32 %v2940, %v2651
      %v2942 = vadd.f32 %v2941, %v2652
      %v2943 = vadd.f32 %v2942, %v2653
      %v2944 = vadd.f32 %v2943, %v2654
      %v2945 = vadd.f32 %v2944, %v2655
      %v2946 = vadd.f32 %v2945, %v2656
      %v2947 = vadd.f32 %v2946, %v2657
      %v2948 = vadd.f32 %v2947, %v2658
      %v2949 = vrot.slane %v2948, 4
      %v2950 = vadd.f32 %v2948, %v2949
      %v2951 = vrot.slane %v2950, 2
      %v2952 = vadd.f32 %v2950, %v2951
      %v2953 = vrot.slane %v2952, 1
      %v2954 = vadd.f32 %v2952, %v2953
      %v2955 = vmul.f32 %v2695, 0.00390625
      %v2956 = vmul.f32 %v2732, 0.00390625
      %v2957 = vmul.f32 %v2769, 0.00390625
      %v2958 = vmul.f32 %v2806, 0.00390625
      %v2959 = vmul.f32 %v2843, 0.00390625
      %v2960 = vmul.f32 %v2880, 0.00390625
      %v2961 = vmul.f32 %v2917, 0.00390625
      %v2962 = vmul.f32 %v2954, 0.00390625
      %v2963 = vld [vmem:[%s2] sm:$0xff]
      %v2964 = vld [vmem:[%s2 + $0x8] sm:$0xff]
      %v2965 = vld [vmem:[%s2 + $0x10] sm:$0xff]
      %v2966 = vld [vmem:[%s2 + $0x18] sm:$0xff]
      %v2967 = vld [vmem:[%s2 + $0x20] sm:$0xff]
      %v2968 = vld [vmem:[%s2 + $0x28] sm:$0xff]
      %v2969 = vld [vmem:[%s2 + $0x30] sm:$0xff]
      %v2970 = vld [vmem:[%s2 + $0x38] sm:$0xff]
      %v2971 = vld [vmem:[%s2 + $0x40] sm:$0xff]
      %v2972 = vld [vmem:[%s2 + $0x48] sm:$0xff]
      %v2973 = vld [vmem:[%s2 + $0x50] sm:$0xff]
      %v2974 = vld [vmem:[%s2 + $0x58] sm:$0xff]
      %v2975 = vld [vmem:[%s2 + $0x60] sm:$0xff]
      %v2976 = vld [vmem:[%s2 + $0x68] sm:$0xff]
      %v2977 = vld [vmem:[%s2 + $0x70] sm:$0xff]
      %v2978 = vld [vmem:[%s2 + $0x78] sm:$0xff]
      %v2979 = vld [vmem:[%s3] sm:$0x1]
      %v2981 = vlaneseq
      %v2982 = vshrl.u32 %v2981, 7
      %v2983 = vsub.s32 0, %v2982
      %v2984 = vrot.slane %v2979, %v2983
      %vm2994 = vcmask 1041409
      %v2995 = vsel %vm2994, %v2956, %v2955
      %vm2996 = vcmask 1042434
      %v2997 = vsel %vm2996, %v2957, %v2995
      %vm2998 = vcmask 1043459
      %v2999 = vsel %vm2998, %v2958, %v2997
      %vm3000 = vcmask 1044484
      %v3001 = vsel %vm3000, %v2959, %v2999
      %vm3002 = vcmask 1045509
      %v3003 = vsel %vm3002, %v2960, %v3001
      %vm3004 = vcmask 1046534
      %v3005 = vsel %vm3004, %v2961, %v3003
      %vm3006 = vcmask 1047559
      %v3007 = vsel %vm3006, %v2962, %v3005
      %3009 = vmatprep.subr.mxu0 0.0
      %3010 = vmatpush1.msra.mxu0 %v2963
      %3011 = vmatprep.subr.mxu0 0.0
      %3012 = vmatpush1.msra.mxu0 %v2964
      %3013 = vmatprep.subr.mxu0 0.0
      %3014 = vmatpush1.msra.mxu0 %v2965
      %3015 = vmatprep.subr.mxu0 0.0
      %3016 = vmatpush1.msra.mxu0 %v2966
      %3017 = vmatprep.subr.mxu0 0.0
      %3018 = vmatpush1.msra.mxu0 %v2967
      %3019 = vmatprep.subr.mxu0 0.0
      %3020 = vmatpush1.msra.mxu0 %v2968
      %3021 = vmatprep.subr.mxu0 0.0
      %3022 = vmatpush1.msra.mxu0 %v2969
      %3023 = vmatprep.subr.mxu0 0.0
      %3024 = vmatpush1.msra.mxu0 %v2970
      %3025 = vmatprep.subr.mxu0 0.0
      %3026 = vmatpush1.msra.mxu0 %v2971
      %3027 = vmatprep.subr.mxu0 0.0
      %3028 = vmatpush1.msra.mxu0 %v2972
      %3029 = vmatprep.subr.mxu0 0.0
      %3030 = vmatpush1.msra.mxu0 %v2973
      %3031 = vmatprep.subr.mxu0 0.0
      %3032 = vmatpush1.msra.mxu0 %v2974
      %3033 = vmatprep.subr.mxu0 0.0
      %3034 = vmatpush1.msra.mxu0 %v2975
      %3035 = vmatprep.subr.mxu0 0.0
      %3036 = vmatpush1.msra.mxu0 %v2976
      %3037 = vmatprep.subr.mxu0 0.0
      %3038 = vmatpush1.msra.mxu0 %v2977
      %3039 = vmatprep.subr.mxu0 0.0
      %3040 = vmatpush1.msra.mxu0 %v2978
      %3041 = vmatprep.subr.mxu0 0.0
      %3042 = vmatpush1.msra.mxu0 0.0
      %3043 = vmatprep.subr.mxu0 0.0
      %3044 = vmatpush1.msra.mxu0 0.0
      %3045 = vmatprep.subr.mxu0 0.0
      %3046 = vmatpush1.msra.mxu0 0.0
      %3047 = vmatprep.subr.mxu0 0.0
      %3048 = vmatpush1.msra.mxu0 0.0
      %3049 = vmatprep.subr.mxu0 0.0
      %3050 = vmatpush1.msra.mxu0 0.0
      %3051 = vmatprep.subr.mxu0 0.0
      %3052 = vmatpush1.msra.mxu0 0.0
      %3053 = vmatprep.subr.mxu0 0.0
      %3054 = vmatpush1.msra.mxu0 0.0
      %3055 = vmatprep.subr.mxu0 0.0
      %3056 = vmatpush1.msra.mxu0 0.0
      %3057 = vmatprep.subr.mxu0 0.0
      %3058 = vmatpush1.msra.mxu0 0.0
      %3059 = vmatprep.subr.mxu0 0.0
      %3060 = vmatpush1.msra.mxu0 0.0
      %3061 = vmatprep.subr.mxu0 0.0
      %3062 = vmatpush1.msra.mxu0 0.0
      %3063 = vmatprep.subr.mxu0 0.0
      %3064 = vmatpush1.msra.mxu0 0.0
      %3065 = vmatprep.subr.mxu0 0.0
      %3066 = vmatpush1.msra.mxu0 0.0
      %3067 = vmatprep.subr.mxu0 0.0
      %3068 = vmatpush1.msra.mxu0 0.0
      %3069 = vmatprep.subr.mxu0 0.0
      %3070 = vmatpush1.msra.mxu0 0.0
      %3071 = vmatprep.subr.mxu0 0.0
      %3072 = vmatpush1.msra.mxu0 0.0
      %3073 = vmatprep.mubr.f32.mxu0 0.0
      %3074 = vmatmul.mubr.f32.gmra.mrb[0].mxu0 %v3007
      %v3075 = vpop.f32.mrb[0].mxu0
      %v3076 = vadd.f32 %v2984, %v3075
      %v3077 = vpop.f32.mrb[0].mxu0
      %3078 = vdwg.mxu0
      %v3079 = vmul.f32 %v3076, %v3076
      %3080 = vadd.xlane.f32.xlu0 %v3079
      %v3081 = vpop.xlane.xlu0 %3080
      %v3082 = vmax.f32 %v3081, 1e-24
      %v3083 = vrsqrt.pop %v3082
      %v3084 = vmul.f32 %v3076, %v3083
      %3085 = vst [vmem:[#allocation2] sm:$0xff] %v3084
    $region29: #{tpu_custom_call.1} parent=1 // pred_fallthru
      _
    %v3086 = vld [vmem:[#allocation2] sm:$0xff]
    %v3087 = vld [vmem:[%s4] sm:$0xff]
    %v3088 = vld [vmem:[%s4 + $0x8] sm:$0xff]
    %v3089 = vld [vmem:[%s4 + $0x10] sm:$0xff]
    %v3090 = vld [vmem:[%s4 + $0x18] sm:$0xff]
    %v3091 = vld [vmem:[%s4 + $0x20] sm:$0xff]
    %v3092 = vld [vmem:[%s4 + $0x28] sm:$0xff]
    %v3093 = vld [vmem:[%s4 + $0x30] sm:$0xff]
    %v3094 = vld [vmem:[%s4 + $0x38] sm:$0xff]
    %v3095 = vld [vmem:[%s4 + $0x40] sm:$0xff]
    %v3096 = vld [vmem:[%s4 + $0x48] sm:$0xff]
    %v3097 = vld [vmem:[%s4 + $0x50] sm:$0xff]
    %v3098 = vld [vmem:[%s4 + $0x58] sm:$0xff]
    %v3099 = vld [vmem:[%s4 + $0x60] sm:$0xff]
    %v3100 = vld [vmem:[%s4 + $0x68] sm:$0xff]
    %v3101 = vld [vmem:[%s4 + $0x70] sm:$0xff]
    %v3102 = vld [vmem:[%s4 + $0x78] sm:$0xff]
    %3103 = vmatprep.subr.mxu0 0.0
    %3104 = vmatpush1.msra.mxu0 %v3087
    %3105 = vmatprep.subr.mxu0 0.0
    %3106 = vmatpush1.msra.mxu0 %v3088
    %3107 = vmatprep.subr.mxu0 0.0
    %3108 = vmatpush1.msra.mxu0 %v3089
    %3109 = vmatprep.subr.mxu0 0.0
    %3110 = vmatpush1.msra.mxu0 %v3090
    %3111 = vmatprep.subr.mxu0 0.0
    %3112 = vmatpush1.msra.mxu0 %v3091
    %3113 = vmatprep.subr.mxu0 0.0
    %3114 = vmatpush1.msra.mxu0 %v3092
    %3115 = vmatprep.subr.mxu0 0.0
    %3116 = vmatpush1.msra.mxu0 %v3093
    %3117 = vmatprep.subr.mxu0 0.0
    %3118 = vmatpush1.msra.mxu0 %v3094
    %3119 = vmatprep.subr.mxu0 0.0
    %3120 = vmatpush1.msra.mxu0 %v3095
    %3121 = vmatprep.subr.mxu0 0.0
    %3122 = vmatpush1.msra.mxu0 %v3096
    %3123 = vmatprep.subr.mxu0 0.0
    %3124 = vmatpush1.msra.mxu0 %v3097
    %3125 = vmatprep.subr.mxu0 0.0
    %3126 = vmatpush1.msra.mxu0 %v3098
    %3127 = vmatprep.subr.mxu0 0.0
    %3128 = vmatpush1.msra.mxu0 %v3099
    %3129 = vmatprep.subr.mxu0 0.0
    %3130 = vmatpush1.msra.mxu0 %v3100
    %3131 = vmatprep.subr.mxu0 0.0
    %3132 = vmatpush1.msra.mxu0 %v3101
    %3133 = vmatprep.subr.mxu0 0.0
    %3134 = vmatpush1.msra.mxu0 %v3102
    %3135 = vmatprep.subr.mxu0 0.0
    %3136 = vmatpush1.msra.mxu0 0.0
    %3137 = vmatprep.subr.mxu0 0.0
    %3138 = vmatpush1.msra.mxu0 0.0
    %3139 = vmatprep.subr.mxu0 0.0
    %3140 = vmatpush1.msra.mxu0 0.0
    %3141 = vmatprep.subr.mxu0 0.0
    %3142 = vmatpush1.msra.mxu0 0.0
    %3143 = vmatprep.subr.mxu0 0.0
    %3144 = vmatpush1.msra.mxu0 0.0
    %3145 = vmatprep.subr.mxu0 0.0
    %3146 = vmatpush1.msra.mxu0 0.0
    %3147 = vmatprep.subr.mxu0 0.0
    %3148 = vmatpush1.msra.mxu0 0.0
    %3149 = vmatprep.subr.mxu0 0.0
    %3150 = vmatpush1.msra.mxu0 0.0
    %3151 = vmatprep.subr.mxu0 0.0
    %3152 = vmatpush1.msra.mxu0 0.0
    %3153 = vmatprep.subr.mxu0 0.0
    %3154 = vmatpush1.msra.mxu0 0.0
    %3155 = vmatprep.subr.mxu0 0.0
    %3156 = vmatpush1.msra.mxu0 0.0
    %3157 = vmatprep.subr.mxu0 0.0
    %3158 = vmatpush1.msra.mxu0 0.0
    %3159 = vmatprep.subr.mxu0 0.0
    %3160 = vmatpush1.msra.mxu0 0.0
    %3161 = vmatprep.subr.mxu0 0.0
    %3162 = vmatpush1.msra.mxu0 0.0
    %3163 = vmatprep.subr.mxu0 0.0
    %3164 = vmatpush1.msra.mxu0 0.0
    %3165 = vmatprep.subr.mxu0 0.0
    %3166 = vmatpush1.msra.mxu0 0.0
    %3167 = vmatprep.mubr.f32.mxu0 0.0
    %3168 = vmatmul.mubr.f32.gmra.mrb[0].mxu0 %v3086
    %v3169 = vpop.f32.mrb[0].mxu0
    %v3170 = vadd.f32 0.0, %v3169
    %v3171 = vpop.f32.mrb[0].mxu0
    %3172 = vdwg.mxu0
    %v3173 = vmul.f32 %v3170, %v3170
    %v3174 = vsub.f32 1.0, %v3173
    %v3175 = vmax.f32 %v3174, 0.0
    %v3176 = vrsqrt.pop %v3175
    %v3177 = vmul.f32 %v3175, %v3176
    %vm3178 = vcmp.eq.f32.partialorder %v3175, inf
    %v3179 = vsel %vm3178, %v3175, %v3177
    %vm3180 = vcmp.eq.f32.partialorder %v3175, 0.0
    %v3181 = vand.u32 %v3175, 2147483648
    %v3182 = vsel %vm3180, %v3181, %v3179
    %v3183 = vmul.f32 %v3170, 0.87758255
    %v3184 = vmul.f32 %v3182, 0.47942555
    %v3185 = vsub.f32 %v3183, %v3184
    %vm3186 = vcmp.gt.f32.partialorder %v3170, -0.87758255
    %v3187 = vsub.f32 %v3170, 0.23971277
    %v3188 = vsel %vm3186, %v3185, %v3187
    %v3189 = vlaneseq
    %v3190 = vand.u32 %v3189, 127
    %s3191 = smul.u32 0, 128
    %v3192 = vstv %s3191
    %v3193 = vadd.s32 %v3190, %v3192
    %v3194 = vld [vmem:[%s5] sm:$0xff]
    %3195 = vset.pattern.permute.xlu0 0
    %3196 = vperm.xlu0 %3195, %v3194
    %v3197 = vpop.permute.xlu0 %3196
    %vm3198 = vcmp.eq.s32.totalorder %v3193, %v3197
    %v3199 = vsel %vm3198, 1, 0
    %v3200 = vcvt.s32.f32 %v3199
    %v3201 = vmul.f32 %v3200, %v3188
    %v3202 = vsub.f32 1.0, %v3200
    %v3203 = vmul.f32 %v3202, %v3170
    %v3204 = vadd.f32 %v3201, %v3203
    %v3205 = vmul.f32 %v3204, 30.0
    %3206 = vst [vmem:[#allocation3] sm:$0xff] %v3205
    // Predicated region
    $region30: #{tpu_custom_call.1} parent=1 // pred_check
      _
    $region31: #{tpu_custom_call.1} parent=1 // pred_check_branch
      %3208 = sbr.rel (0) target = $region33
    $region32: #{tpu_custom_call.1} parent=1 // pred_region
      %s3210 = ssub.s32 128, 128
      %3211 = vsyncadd [#allocation4], %s3210
      %s3213 = sshll.u32 [#allocation3], 4
      %s3214 = int_to_ptr.vmem [resolvable:$true] %s3213
      %3216 = dma.vmem_to_hbm [thread:$0]  %s3214, 128, %s6, [#allocation4]
    $region33: #{tpu_custom_call.1} parent=1 // pred_fallthru
      _
    // Predicated region
    $region34: #{tpu_custom_call.1} parent=1 // pred_check
      _
    $region35: #{tpu_custom_call.1} parent=1 // pred_check_branch
      %3218 = sbr.rel (0) target = $region37
    $region36: #{tpu_custom_call.1} parent=1 // pred_region
      %3219 = dma.done [#allocation4], 128
    $region37: #{tpu_custom_call.1} parent=1 // pred_fallthru
      _
    %3220 = vsyncpa [#allocation4], 1

</llo_original>
